<compile_context>
chip_gen: v7x
topology: tpu7x:2x2x1
jax: 0.10.0
libtpu: 0.0.40
codegen_flags: <defaults>
</compile_context>

<pallas_src>
import jax
import jax.numpy as jnp
import numpy as np
from jax.experimental import pallas as pl
from jax.experimental.pallas import tpu as pltpu


def _make_yolo_loss_kernel(B, half, w_box, w_conf, w_euc,
                           n_images, n_cells, tile, needs_mask):
    """B: boxes per cell, half: bbox_w/img_width, tile: images per grid step."""
    inv_cells = 1.0 / float(n_cells)
    inv_images = 1.0 / float(n_images)
    eps = 1e-6  # shared by IoU denominator and PairwiseDistance

    def kernel(p_ref, t_ref, o_ref, bacc, cacc, dacc):
        # p_ref: (5B, M, tile), t_ref: (5, M, tile), o_ref: (1, 128) VMEM
        # bacc/cacc/dacc: (1, tile) f32 VMEM accumulators (per-lane partials)
        step = pl.program_id(0)

        @pl.when(step == 0)
        def _():
            bacc[...] = jnp.zeros_like(bacc)
            cacc[...] = jnp.zeros_like(cacc)
            dacc[...] = jnp.zeros_like(dacc)

        def p(c):
            return p_ref[c].astype(jnp.float32)      # (M, tile)

        def t(c):
            return t_ref[c].astype(jnp.float32)      # (M, tile)

        def square(x1, y1, x2, y2):
            # midpoint of (x1,y1,x2,y2), then fixed half-width square
            cx = x1 + (x2 - x1) * 0.5
            cy = y1 + (y2 - y1) * 0.5
            return (cx - half, cy - half, cx + half, cy + half)

        def inter_union(b, tb):
            x1 = jnp.maximum(b[0], tb[0])
            y1 = jnp.maximum(b[1], tb[1])
            x2 = jnp.minimum(b[2], tb[2])
            y2 = jnp.minimum(b[3], tb[3])
            inter = jnp.maximum(x2 - x1, 0.0) * jnp.maximum(y2 - y1, 0.0)
            a1 = jnp.abs((b[2] - b[0]) * (b[3] - b[1]))
            a2 = jnp.abs((tb[2] - tb[0]) * (tb[3] - tb[1]))
            return inter, a1 + a2 - inter + eps      # union strictly > 0

        exists = t(0)                                # objectness mask
        tbox = (t(1), t(2), t(3), t(4))

        box1 = square(p(1), p(2), p(3), p(4))
        if B == 2:
            box2 = square(p(6), p(7), p(8), p(9))
            i1, u1 = inter_union(box1, tbox)
            i2, u2 = inter_union(box2, tbox)
            # iou2 > iou1  <=>  i2*u1 > i1*u2  (no divisions; torch.max
            # tie-break returns the first index, so strict '>' selects box 2)
            best = (i2 * u1 > i1 * u2).astype(jnp.float32)
            sel = tuple(best * box2[k] + (1.0 - best) * box1[k] for k in range(4))
            conf = best * p(5) + (1.0 - best) * p(0)
        else:
            sel = box1
            conf = p(0)

        # fused exists-masking: the masked differences feed both the box MSE
        # and the per-image midpoint-distance term.
        d = tuple(exists * (sel[k] - tbox[k]) for k in range(4))

        box_sq = d[0] * d[0] + d[1] * d[1] + d[2] * d[2] + d[3] * d[3]
        bacc[...] += jnp.sum(box_sq, axis=0, keepdims=True)

        cdiff = exists * (conf - exists)             # target conf channel == exists
        cacc[...] += jnp.sum(cdiff * cdiff, axis=0, keepdims=True)

        # per-image sums over the S*S cells (sublane reduce) -> (1, tile)
        s0 = jnp.sum(d[0], axis=0, keepdims=True)
        s1 = jnp.sum(d[1], axis=0, keepdims=True)
        s2 = jnp.sum(d[2], axis=0, keepdims=True)
        s3 = jnp.sum(d[3], axis=0, keepdims=True)
        # pred_point - target_point; PairwiseDistance eps is added to the diff
        dx = s0 + (s2 - s0) * 0.5 + eps
        dy = s1 + (s3 - s1) * 0.5 + eps
        dist = jnp.sqrt(dx * dx + dy * dy)
        if needs_mask:
            img = step * tile + jax.lax.broadcasted_iota(jnp.int32, (1, tile), 1)
            dist = jnp.where(img < n_images, dist, 0.0)
        dacc[...] += dist

        @pl.when(step == pl.num_programs(0) - 1)
        def _():
            box_loss = jnp.sum(bacc[...], axis=1, keepdims=True) * inv_cells
            conf_loss = jnp.sum(cacc[...], axis=1, keepdims=True) * inv_cells
            point_loss = jnp.sum(dacc[...], axis=1, keepdims=True) * inv_images
            wb = box_loss * w_box
            wc = conf_loss * w_conf
            wd = point_loss * w_euc
            tot = wb + wc + wd
            lane = jax.lax.broadcasted_iota(jnp.int32, (1, 128), 1)
            o_ref[...] = (jnp.where(lane == 0, tot, 0.0)
                          + jnp.where(lane == 1, wb, 0.0)
                          + jnp.where(lane == 2, wc, 0.0)
                          + jnp.where(lane == 3, wd, 0.0))

    return kernel


class YoloLossPallas:
    """Pallas-TPU implementation of YoloLoss.forward.

    __call__ returns the total loss (w_box*box + w_conf*conf + w_euc*dist),
    matching the PyTorch module; the weighted terms are stored in self.loss.
    """

    def __init__(self, dataset_params, training_params, max_images_per_tile=1024):
        self.S = training_params["SxS_Grid"]
        self.B = training_params["num_boxes"]
        self.C = training_params["num_classes"]
        self.bbox_w = training_params["bbox_w"]
        self.img_width = dataset_params["img_width"]
        self.w_box_loss = training_params["w_box_loss"]
        self.w_conf_loss = training_params["w_conf_loss"]
        self.w_euclidian_loss = training_params["w_euclidian_loss"]
        self.max_images_per_tile = int(max_images_per_tile)
        self.loss = None
        # TODO(synk): the PyTorch module also overwrites the `predictions`
        # tensor in place and stashes per-image boxes/points in self.memory;
        # only the returned loss terms are produced by the kernel.

    def __call__(self, predictions, target):
        S, B, C = self.S, self.B, self.C
        CH = C + 5 * B
        M = S * S
        if target.ndim == 5:
            target = target.reshape((-1,) + target.shape[2:])
        predictions = predictions.reshape(-1, S, S, CH)
        N = predictions.shape[0]

        # Only the channels the loss reads; one fused slice+transpose to a
        # channel-major, image-lane-dense layout. Native dtype is kept
        # (kernel up-casts to f32), avoiding an extra f32 materialization.
        p_cm = jnp.transpose(predictions.reshape(N, M, CH)[..., C:C + 5 * B],
                             (2, 1, 0))               # (5B, M, N)
        t_cm = jnp.transpose(target.reshape(N, M, CH)[..., C:C + 5],
                             (2, 1, 0))               # (5,  M, N)

        # Tile over images (lane axis). Blocks stay small enough for v7x's
        # 64 MiB VMEM and v5e's 16 MiB scoped default, double-buffered.
        max_tile = self.max_images_per_tile
        if N <= max_tile:
            tile, n_pad = N, N                        # single block (full dim)
        else:
            tile = max(128, (max_tile // 128) * 128)  # lane tile: multiple of 128
            n_pad = ((N + tile - 1) // tile) * tile
            if n_pad != N:
                p_cm = jnp.pad(p_cm, ((0, 0), (0, 0), (0, n_pad - N)))
                t_cm = jnp.pad(t_cm, ((0, 0), (0, 0), (0, n_pad - N)))
        grid = (n_pad // tile,)
        needs_mask = n_pad != N

        kernel = _make_yolo_loss_kernel(
            B,
            float(self.bbox_w) / float(self.img_width),
            float(self.w_box_loss),
            float(self.w_conf_loss),
            float(self.w_euclidian_loss),
            N,            # real images (distance-loss mean + padding mask)
            N * M,        # real cells (box / conf MSE normalization)
            tile,
            needs_mask,
        )

        cost = pl.CostEstimate(
            flops=int(90 * n_pad * M),
            transcendentals=int(n_pad),
            bytes_accessed=int(p_cm.size * p_cm.dtype.itemsize
                               + t_cm.size * t_cm.dtype.itemsize + 512),
        )

        out = pl.pallas_call(
            kernel,
            out_shape=jax.ShapeDtypeStruct((1, 128), jnp.float32),
            grid=grid,
            in_specs=[
                pl.BlockSpec((5 * B, M, tile), lambda i: (0, 0, i)),
                pl.BlockSpec((5, M, tile), lambda i: (0, 0, i)),
            ],
            out_specs=pl.BlockSpec((1, 128), lambda i: (0, 0)),
            scratch_shapes=[
                pltpu.VMEM((1, tile), jnp.float32),   # box  sq-err partials
                pltpu.VMEM((1, tile), jnp.float32),   # conf sq-err partials
                pltpu.VMEM((1, tile), jnp.float32),   # distance partials
            ],
            compiler_params=pltpu.CompilerParams(
                dimension_semantics=("arbitrary",)),
            cost_estimate=cost,
        )(p_cm, t_cm)

        self.loss = {"box_loss": out[0, 1],
                     "conf_loss": out[0, 2],
                     "distance_loss": out[0, 3]}
        return out[0, 0]


def _reference_loss(predictions, target, dataset_params, training_params):
    """Plain-JAX reference mirroring the PyTorch forward (for validation)."""
    S = training_params["SxS_Grid"]
    B = training_params["num_boxes"]
    C = training_params["num_classes"]
    r = training_params["bbox_w"] / dataset_params["img_width"]
    CH = C + 5 * B
    p = predictions.reshape(-1, S, S, CH).astype(jnp.float32)
    t = target.astype(jnp.float32)
    if t.ndim == 5:
        t = t.reshape((-1,) + t.shape[2:])

    def square(b):
        pt = b[..., :2] + (b[..., 2:] - b[..., :2]) / 2
        return jnp.concatenate([pt - r, pt + r], axis=-1)

    def iou(a, b):
        x1 = jnp.maximum(a[..., 0:1], b[..., 0:1])
        y1 = jnp.maximum(a[..., 1:2], b[..., 1:2])
        x2 = jnp.minimum(a[..., 2:3], b[..., 2:3])
        y2 = jnp.minimum(a[..., 3:4], b[..., 3:4])
        inter = jnp.maximum(x2 - x1, 0.0) * jnp.maximum(y2 - y1, 0.0)
        a1 = jnp.abs((a[..., 2:3] - a[..., 0:1]) * (a[..., 3:4] - a[..., 1:2]))
        a2 = jnp.abs((b[..., 2:3] - b[..., 0:1]) * (b[..., 3:4] - b[..., 1:2]))
        return inter / (a1 + a2 - inter + 1e-6)

    b1 = square(p[..., C + 1:C + 5])
    tb = t[..., C + 1:C + 5]
    exists = t[..., C:C + 1]
    box_targets = exists * tb
    if B == 2:
        b2 = square(p[..., C + 6:C + 10])
        i1 = iou(b1, tb)
        i2 = iou(b2, tb)
        best = (i2 > i1).astype(jnp.float32)
        box_pred = exists * (best * b2 + (1.0 - best) * b1)
        conf = best * p[..., C + 5:C + 6] + (1.0 - best) * p[..., C:C + 1]
    else:
        box_pred = exists * b1
        conf = p[..., C:C + 1]

    n_cells = box_pred.shape[0] * S * S
    box_loss = jnp.sum((box_pred - box_targets) ** 2) / n_cells
    conf_loss = jnp.mean((exists * conf - exists * t[..., C:C + 1]) ** 2)
    pred_box = box_pred.sum(-2).sum(-2)
    tgt_box = box_targets.sum(-2).sum(-2)
    pp = pred_box[..., :2] + (pred_box[..., 2:] - pred_box[..., :2]) / 2
    tp = tgt_box[..., :2] + (tgt_box[..., 2:] - tgt_box[..., :2]) / 2
    dist = jnp.sqrt(jnp.sum((pp - tp + 1e-6) ** 2, axis=-1))
    point_loss = dist.mean()
    return (box_loss * training_params["w_box_loss"]
            + conf_loss * training_params["w_conf_loss"]
            + point_loss * training_params["w_euclidian_loss"])


if __name__ == "__main__":
    dataset_params = {"img_width": 448}
    training_params = {
        "SxS_Grid": 7,
        "num_boxes": 2,
        "num_classes": 1,
        "bbox_w": 20.0,
        "w_box_loss": 5.0,
        "w_conf_loss": 1.0,
        "w_euclidian_loss": 0.1,
    }
    S, B, C = 7, 2, 1
    CH = C + 5 * B  # 11

    def make_inputs(key, n):
        kp, kt, ke = jax.random.split(key, 3)
        preds = jax.random.uniform(kp, (n, S * S * CH), dtype=jnp.float32)
        tgt = jax.random.uniform(kt, (n, S, S, CH), dtype=jnp.float32)
        exists = (jax.random.uniform(ke, (n, S, S, 1)) > 0.7).astype(jnp.float32)
        tgt = tgt.at[..., C:C + 1].set(exists)
        return preds, tgt

    key = jax.random.PRNGKey(0)
    k1, k2 = jax.random.split(key)

    # Case 1: tiny batch -> single-block path.
    preds, tgt = make_inputs(k1, 2)
    loss_fn = YoloLossPallas(dataset_params, training_params)
    out = jax.block_until_ready(loss_fn(preds, tgt))
    ref = jax.block_until_ready(
        _reference_loss(preds, tgt, dataset_params, training_params))
    np.testing.assert_allclose(np.asarray(out), np.asarray(ref),
                               rtol=2e-3, atol=2e-3)

    # Case 2: batch larger than one tile -> gridded accumulation + pad mask.
    preds, tgt = make_inputs(k2, 130)
    loss_fn_tiled = YoloLossPallas(dataset_params, training_params,
                                   max_images_per_tile=128)
    out2 = jax.block_until_ready(loss_fn_tiled(preds, tgt))
    ref2 = jax.block_until_ready(
        _reference_loss(preds, tgt, dataset_params, training_params))
    np.testing.assert_allclose(np.asarray(out2), np.asarray(ref2),
                               rtol=2e-3, atol=2e-3)

    print("KERNEL_OK")
</pallas_src>

<mosaic_0001>
module attributes {stable_mosaic.version = 11 : i64} {
  func.func @kernel(%arg0: i32, %arg1: memref<10x49x2xf32, #tpu.memory_space<vmem>>, %arg2: memref<5x49x2xf32, #tpu.memory_space<vmem>>, %arg3: memref<1x128xf32, #tpu.memory_space<vmem>>, %arg4: memref<1x2xf32, #tpu.memory_space<vmem>>, %arg5: memref<1x2xf32, #tpu.memory_space<vmem>>, %arg6: memref<1x2xf32, #tpu.memory_space<vmem>>) attributes {dimension_semantics = [#tpu.dimension_semantics<arbitrary>], iteration_bounds = array<i64: 1>, scalar_prefetch = 0 : i64, scratch_operands = 3 : i64, tpu.core_type = #tpu.core_type<tc>, window_params = [{transform_indices = @transform_0, window_bounds = array<i64: 10, 49, 2>}, {transform_indices = @transform_1, window_bounds = array<i64: 5, 49, 2>}, {pipeline_mode = #tpu.pipeline_mode<synchronous>, transform_indices = @transform_2, window_bounds = array<i64: 1, 128>}]} {
    %c0_i32 = arith.constant 0 : i32
    %0 = arith.cmpi eq, %arg0, %c0_i32 : i32
    %1 = arith.extui %0 : i1 to i32
    %c0_i32_0 = arith.constant 0 : i32
    %2 = arith.cmpi ne, %1, %c0_i32_0 : i32
    scf.if %2 {
      %cst_82 = arith.constant 0.000000e+00 : f32
      %199 = vector.broadcast %cst_82 : f32 to vector<1x2xf32>
      %c0_83 = arith.constant 0 : index
      %c0_84 = arith.constant 0 : index
      %200 = vector.load %arg4[%c0_83, %c0_84] : memref<1x2xf32, #tpu.memory_space<vmem>>, vector<1x2xf32>
      tpu.vector_store %arg4[%c0_83, %c0_84], %199 {strides = array<i32>} : memref<1x2xf32, #tpu.memory_space<vmem>>, vector<1x2xf32>,
      %cst_85 = arith.constant 0.000000e+00 : f32
      %201 = vector.broadcast %cst_85 : f32 to vector<1x2xf32>
      %c0_86 = arith.constant 0 : index
      %c0_87 = arith.constant 0 : index
      %202 = vector.load %arg5[%c0_86, %c0_87] : memref<1x2xf32, #tpu.memory_space<vmem>>, vector<1x2xf32>
      tpu.vector_store %arg5[%c0_86, %c0_87], %201 {strides = array<i32>} : memref<1x2xf32, #tpu.memory_space<vmem>>, vector<1x2xf32>,
      %cst_88 = arith.constant 0.000000e+00 : f32
      %203 = vector.broadcast %cst_88 : f32 to vector<1x2xf32>
      %c0_89 = arith.constant 0 : index
      %c0_90 = arith.constant 0 : index
      %204 = vector.load %arg6[%c0_89, %c0_90] : memref<1x2xf32, #tpu.memory_space<vmem>>, vector<1x2xf32>
      tpu.vector_store %arg6[%c0_89, %c0_90], %203 {strides = array<i32>} : memref<1x2xf32, #tpu.memory_space<vmem>>, vector<1x2xf32>,
    } else {
    }
    %c0 = arith.constant 0 : index
    %c0_1 = arith.constant 0 : index
    %c0_2 = arith.constant 0 : index
    %3 = vector.load %arg2[%c0, %c0_1, %c0_2] : memref<5x49x2xf32, #tpu.memory_space<vmem>>, vector<1x49x2xf32>
    %4 = vector.shape_cast %3 : vector<1x49x2xf32> to vector<49x2xf32>
    %c1 = arith.constant 1 : index
    %c0_3 = arith.constant 0 : index
    %c0_4 = arith.constant 0 : index
    %5 = vector.load %arg2[%c1, %c0_3, %c0_4] : memref<5x49x2xf32, #tpu.memory_space<vmem>>, vector<1x49x2xf32>
    %6 = vector.shape_cast %5 : vector<1x49x2xf32> to vector<49x2xf32>
    %c2 = arith.constant 2 : index
    %c0_5 = arith.constant 0 : index
    %c0_6 = arith.constant 0 : index
    %7 = vector.load %arg2[%c2, %c0_5, %c0_6] : memref<5x49x2xf32, #tpu.memory_space<vmem>>, vector<1x49x2xf32>
    %8 = vector.shape_cast %7 : vector<1x49x2xf32> to vector<49x2xf32>
    %c3 = arith.constant 3 : index
    %c0_7 = arith.constant 0 : index
    %c0_8 = arith.constant 0 : index
    %9 = vector.load %arg2[%c3, %c0_7, %c0_8] : memref<5x49x2xf32, #tpu.memory_space<vmem>>, vector<1x49x2xf32>
    %10 = vector.shape_cast %9 : vector<1x49x2xf32> to vector<49x2xf32>
    %c4 = arith.constant 4 : index
    %c0_9 = arith.constant 0 : index
    %c0_10 = arith.constant 0 : index
    %11 = vector.load %arg2[%c4, %c0_9, %c0_10] : memref<5x49x2xf32, #tpu.memory_space<vmem>>, vector<1x49x2xf32>
    %12 = vector.shape_cast %11 : vector<1x49x2xf32> to vector<49x2xf32>
    %c1_11 = arith.constant 1 : index
    %c0_12 = arith.constant 0 : index
    %c0_13 = arith.constant 0 : index
    %13 = vector.load %arg1[%c1_11, %c0_12, %c0_13] : memref<10x49x2xf32, #tpu.memory_space<vmem>>, vector<1x49x2xf32>
    %14 = vector.shape_cast %13 : vector<1x49x2xf32> to vector<49x2xf32>
    %c2_14 = arith.constant 2 : index
    %c0_15 = arith.constant 0 : index
    %c0_16 = arith.constant 0 : index
    %15 = vector.load %arg1[%c2_14, %c0_15, %c0_16] : memref<10x49x2xf32, #tpu.memory_space<vmem>>, vector<1x49x2xf32>
    %16 = vector.shape_cast %15 : vector<1x49x2xf32> to vector<49x2xf32>
    %c3_17 = arith.constant 3 : index
    %c0_18 = arith.constant 0 : index
    %c0_19 = arith.constant 0 : index
    %17 = vector.load %arg1[%c3_17, %c0_18, %c0_19] : memref<10x49x2xf32, #tpu.memory_space<vmem>>, vector<1x49x2xf32>
    %18 = vector.shape_cast %17 : vector<1x49x2xf32> to vector<49x2xf32>
    %c4_20 = arith.constant 4 : index
    %c0_21 = arith.constant 0 : index
    %c0_22 = arith.constant 0 : index
    %19 = vector.load %arg1[%c4_20, %c0_21, %c0_22] : memref<10x49x2xf32, #tpu.memory_space<vmem>>, vector<1x49x2xf32>
    %20 = vector.shape_cast %19 : vector<1x49x2xf32> to vector<49x2xf32>
    %21 = arith.subf %18, %14 : vector<49x2xf32>
    %cst = arith.constant 5.000000e-01 : f32
    %22 = vector.broadcast %cst : f32 to vector<49x2xf32>
    %23 = arith.mulf %21, %22 : vector<49x2xf32>
    %24 = arith.addf %14, %23 : vector<49x2xf32>
    %25 = arith.subf %20, %16 : vector<49x2xf32>
    %cst_23 = arith.constant 5.000000e-01 : f32
    %26 = vector.broadcast %cst_23 : f32 to vector<49x2xf32>
    %27 = arith.mulf %25, %26 : vector<49x2xf32>
    %28 = arith.addf %16, %27 : vector<49x2xf32>
    %cst_24 = arith.constant 0.0446428582 : f32
    %29 = vector.broadcast %cst_24 : f32 to vector<49x2xf32>
    %30 = arith.subf %24, %29 : vector<49x2xf32>
    %cst_25 = arith.constant 0.0446428582 : f32
    %31 = vector.broadcast %cst_25 : f32 to vector<49x2xf32>
    %32 = arith.subf %28, %31 : vector<49x2xf32>
    %cst_26 = arith.constant 0.0446428582 : f32
    %33 = vector.broadcast %cst_26 : f32 to vector<49x2xf32>
    %34 = arith.addf %24, %33 : vector<49x2xf32>
    %cst_27 = arith.constant 0.0446428582 : f32
    %35 = vector.broadcast %cst_27 : f32 to vector<49x2xf32>
    %36 = arith.addf %28, %35 : vector<49x2xf32>
    %c6 = arith.constant 6 : index
    %c0_28 = arith.constant 0 : index
    %c0_29 = arith.constant 0 : index
    %37 = vector.load %arg1[%c6, %c0_28, %c0_29] : memref<10x49x2xf32, #tpu.memory_space<vmem>>, vector<1x49x2xf32>
    %38 = vector.shape_cast %37 : vector<1x49x2xf32> to vector<49x2xf32>
    %c7 = arith.constant 7 : index
    %c0_30 = arith.constant 0 : index
    %c0_31 = arith.constant 0 : index
    %39 = vector.load %arg1[%c7, %c0_30, %c0_31] : memref<10x49x2xf32, #tpu.memory_space<vmem>>, vector<1x49x2xf32>
    %40 = vector.shape_cast %39 : vector<1x49x2xf32> to vector<49x2xf32>
    %c8 = arith.constant 8 : index
    %c0_32 = arith.constant 0 : index
    %c0_33 = arith.constant 0 : index
    %41 = vector.load %arg1[%c8, %c0_32, %c0_33] : memref<10x49x2xf32, #tpu.memory_space<vmem>>, vector<1x49x2xf32>
    %42 = vector.shape_cast %41 : vector<1x49x2xf32> to vector<49x2xf32>
    %c9 = arith.constant 9 : index
    %c0_34 = arith.constant 0 : index
    %c0_35 = arith.constant 0 : index
    %43 = vector.load %arg1[%c9, %c0_34, %c0_35] : memref<10x49x2xf32, #tpu.memory_space<vmem>>, vector<1x49x2xf32>
    %44 = vector.shape_cast %43 : vector<1x49x2xf32> to vector<49x2xf32>
    %45 = arith.subf %42, %38 : vector<49x2xf32>
    %cst_36 = arith.constant 5.000000e-01 : f32
    %46 = vector.broadcast %cst_36 : f32 to vector<49x2xf32>
    %47 = arith.mulf %45, %46 : vector<49x2xf32>
    %48 = arith.addf %38, %47 : vector<49x2xf32>
    %49 = arith.subf %44, %40 : vector<49x2xf32>
    %cst_37 = arith.constant 5.000000e-01 : f32
    %50 = vector.broadcast %cst_37 : f32 to vector<49x2xf32>
    %51 = arith.mulf %49, %50 : vector<49x2xf32>
    %52 = arith.addf %40, %51 : vector<49x2xf32>
    %cst_38 = arith.constant 0.0446428582 : f32
    %53 = vector.broadcast %cst_38 : f32 to vector<49x2xf32>
    %54 = arith.subf %48, %53 : vector<49x2xf32>
    %cst_39 = arith.constant 0.0446428582 : f32
    %55 = vector.broadcast %cst_39 : f32 to vector<49x2xf32>
    %56 = arith.subf %52, %55 : vector<49x2xf32>
    %cst_40 = arith.constant 0.0446428582 : f32
    %57 = vector.broadcast %cst_40 : f32 to vector<49x2xf32>
    %58 = arith.addf %48, %57 : vector<49x2xf32>
    %cst_41 = arith.constant 0.0446428582 : f32
    %59 = vector.broadcast %cst_41 : f32 to vector<49x2xf32>
    %60 = arith.addf %52, %59 : vector<49x2xf32>
    %61 = arith.maximumf %30, %6 : vector<49x2xf32>
    %62 = arith.maximumf %32, %8 : vector<49x2xf32>
    %63 = arith.minimumf %34, %10 : vector<49x2xf32>
    %64 = arith.minimumf %36, %12 : vector<49x2xf32>
    %65 = arith.subf %63, %61 : vector<49x2xf32>
    %cst_42 = arith.constant 0.000000e+00 : f32
    %66 = vector.broadcast %cst_42 : f32 to vector<49x2xf32>
    %67 = arith.maximumf %65, %66 : vector<49x2xf32>
    %68 = arith.subf %64, %62 : vector<49x2xf32>
    %cst_43 = arith.constant 0.000000e+00 : f32
    %69 = vector.broadcast %cst_43 : f32 to vector<49x2xf32>
    %70 = arith.maximumf %68, %69 : vector<49x2xf32>
    %71 = arith.mulf %67, %70 : vector<49x2xf32>
    %72 = arith.subf %34, %30 : vector<49x2xf32>
    %73 = arith.subf %36, %32 : vector<49x2xf32>
    %74 = arith.mulf %72, %73 : vector<49x2xf32>
    %75 = math.absf %74 : vector<49x2xf32>
    %76 = arith.subf %10, %6 : vector<49x2xf32>
    %77 = arith.subf %12, %8 : vector<49x2xf32>
    %78 = arith.mulf %76, %77 : vector<49x2xf32>
    %79 = math.absf %78 : vector<49x2xf32>
    %80 = arith.addf %75, %79 : vector<49x2xf32>
    %81 = arith.subf %80, %71 : vector<49x2xf32>
    %cst_44 = arith.constant 9.99999997E-7 : f32
    %82 = vector.broadcast %cst_44 : f32 to vector<49x2xf32>
    %83 = arith.addf %81, %82 : vector<49x2xf32>
    %84 = arith.maximumf %54, %6 : vector<49x2xf32>
    %85 = arith.maximumf %56, %8 : vector<49x2xf32>
    %86 = arith.minimumf %58, %10 : vector<49x2xf32>
    %87 = arith.minimumf %60, %12 : vector<49x2xf32>
    %88 = arith.subf %86, %84 : vector<49x2xf32>
    %cst_45 = arith.constant 0.000000e+00 : f32
    %89 = vector.broadcast %cst_45 : f32 to vector<49x2xf32>
    %90 = arith.maximumf %88, %89 : vector<49x2xf32>
    %91 = arith.subf %87, %85 : vector<49x2xf32>
    %cst_46 = arith.constant 0.000000e+00 : f32
    %92 = vector.broadcast %cst_46 : f32 to vector<49x2xf32>
    %93 = arith.maximumf %91, %92 : vector<49x2xf32>
    %94 = arith.mulf %90, %93 : vector<49x2xf32>
    %95 = arith.subf %58, %54 : vector<49x2xf32>
    %96 = arith.subf %60, %56 : vector<49x2xf32>
    %97 = arith.mulf %95, %96 : vector<49x2xf32>
    %98 = math.absf %97 : vector<49x2xf32>
    %99 = arith.subf %10, %6 : vector<49x2xf32>
    %100 = arith.subf %12, %8 : vector<49x2xf32>
    %101 = arith.mulf %99, %100 : vector<49x2xf32>
    %102 = math.absf %101 : vector<49x2xf32>
    %103 = arith.addf %98, %102 : vector<49x2xf32>
    %104 = arith.subf %103, %94 : vector<49x2xf32>
    %cst_47 = arith.constant 9.99999997E-7 : f32
    %105 = vector.broadcast %cst_47 : f32 to vector<49x2xf32>
    %106 = arith.addf %104, %105 : vector<49x2xf32>
    %107 = arith.mulf %94, %83 : vector<49x2xf32>
    %108 = arith.mulf %71, %106 : vector<49x2xf32>
    %109 = arith.cmpf ogt, %107, %108 : vector<49x2xf32>
    %110 = arith.extui %109 : vector<49x2xi1> to vector<49x2xi32>
    %111 = arith.sitofp %110 : vector<49x2xi32> to vector<49x2xf32>
    %112 = arith.mulf %111, %54 : vector<49x2xf32>
    %cst_48 = arith.constant 1.000000e+00 : f32
    %113 = vector.broadcast %cst_48 : f32 to vector<49x2xf32>
    %114 = arith.subf %113, %111 : vector<49x2xf32>
    %115 = arith.mulf %114, %30 : vector<49x2xf32>
    %116 = arith.addf %112, %115 : vector<49x2xf32>
    %117 = arith.mulf %111, %56 : vector<49x2xf32>
    %cst_49 = arith.constant 1.000000e+00 : f32
    %118 = vector.broadcast %cst_49 : f32 to vector<49x2xf32>
    %119 = arith.subf %118, %111 : vector<49x2xf32>
    %120 = arith.mulf %119, %32 : vector<49x2xf32>
    %121 = arith.addf %117, %120 : vector<49x2xf32>
    %122 = arith.mulf %111, %58 : vector<49x2xf32>
    %cst_50 = arith.constant 1.000000e+00 : f32
    %123 = vector.broadcast %cst_50 : f32 to vector<49x2xf32>
    %124 = arith.subf %123, %111 : vector<49x2xf32>
    %125 = arith.mulf %124, %34 : vector<49x2xf32>
    %126 = arith.addf %122, %125 : vector<49x2xf32>
    %127 = arith.mulf %111, %60 : vector<49x2xf32>
    %cst_51 = arith.constant 1.000000e+00 : f32
    %128 = vector.broadcast %cst_51 : f32 to vector<49x2xf32>
    %129 = arith.subf %128, %111 : vector<49x2xf32>
    %130 = arith.mulf %129, %36 : vector<49x2xf32>
    %131 = arith.addf %127, %130 : vector<49x2xf32>
    %c5 = arith.constant 5 : index
    %c0_52 = arith.constant 0 : index
    %c0_53 = arith.constant 0 : index
    %132 = vector.load %arg1[%c5, %c0_52, %c0_53] : memref<10x49x2xf32, #tpu.memory_space<vmem>>, vector<1x49x2xf32>
    %133 = vector.shape_cast %132 : vector<1x49x2xf32> to vector<49x2xf32>
    %134 = arith.mulf %111, %133 : vector<49x2xf32>
    %cst_54 = arith.constant 1.000000e+00 : f32
    %135 = vector.broadcast %cst_54 : f32 to vector<49x2xf32>
    %136 = arith.subf %135, %111 : vector<49x2xf32>
    %c0_55 = arith.constant 0 : index
    %c0_56 = arith.constant 0 : index
    %c0_57 = arith.constant 0 : index
    %137 = vector.load %arg1[%c0_55, %c0_56, %c0_57] : memref<10x49x2xf32, #tpu.memory_space<vmem>>, vector<1x49x2xf32>
    %138 = vector.shape_cast %137 : vector<1x49x2xf32> to vector<49x2xf32>
    %139 = arith.mulf %136, %138 : vector<49x2xf32>
    %140 = arith.addf %134, %139 : vector<49x2xf32>
    %141 = arith.subf %116, %6 : vector<49x2xf32>
    %142 = arith.mulf %4, %141 : vector<49x2xf32>
    %143 = arith.subf %121, %8 : vector<49x2xf32>
    %144 = arith.mulf %4, %143 : vector<49x2xf32>
    %145 = arith.subf %126, %10 : vector<49x2xf32>
    %146 = arith.mulf %4, %145 : vector<49x2xf32>
    %147 = arith.subf %131, %12 : vector<49x2xf32>
    %148 = arith.mulf %4, %147 : vector<49x2xf32>
    %149 = arith.mulf %142, %142 : vector<49x2xf32>
    %150 = arith.mulf %144, %144 : vector<49x2xf32>
    %151 = arith.addf %149, %150 : vector<49x2xf32>
    %152 = arith.mulf %146, %146 : vector<49x2xf32>
    %153 = arith.addf %151, %152 : vector<49x2xf32>
    %154 = arith.mulf %148, %148 : vector<49x2xf32>
    %155 = arith.addf %153, %154 : vector<49x2xf32>
    %c0_58 = arith.constant 0 : index
    %c0_59 = arith.constant 0 : index
    %156 = vector.load %arg4[%c0_58, %c0_59] : memref<1x2xf32, #tpu.memory_space<vmem>>, vector<1x2xf32>
    %cst_60 = arith.constant dense<0.000000e+00> : vector<2xf32>
    %157 = vector.multi_reduction <add>, %155, %cst_60 [0] : vector<49x2xf32> to vector<2xf32>
    %158 = vector.shape_cast %157 : vector<2xf32> to vector<1x2xf32>
    %159 = arith.addf %156, %158 : vector<1x2xf32>
    %c0_61 = arith.constant 0 : index
    %c0_62 = arith.constant 0 : index
    %160 = vector.load %arg4[%c0_61, %c0_62] : memref<1x2xf32, #tpu.memory_space<vmem>>, vector<1x2xf32>
    tpu.vector_store %arg4[%c0_61, %c0_62], %159 {strides = array<i32>} : memref<1x2xf32, #tpu.memory_space<vmem>>, vector<1x2xf32>,
    %161 = arith.subf %140, %4 : vector<49x2xf32>
    %162 = arith.mulf %4, %161 : vector<49x2xf32>
    %c0_63 = arith.constant 0 : index
    %c0_64 = arith.constant 0 : index
    %163 = vector.load %arg5[%c0_63, %c0_64] : memref<1x2xf32, #tpu.memory_space<vmem>>, vector<1x2xf32>
    %164 = arith.mulf %162, %162 : vector<49x2xf32>
    %cst_65 = arith.constant dense<0.000000e+00> : vector<2xf32>
    %165 = vector.multi_reduction <add>, %164, %cst_65 [0] : vector<49x2xf32> to vector<2xf32>
    %166 = vector.shape_cast %165 : vector<2xf32> to vector<1x2xf32>
    %167 = arith.addf %163, %166 : vector<1x2xf32>
    %c0_66 = arith.constant 0 : index
    %c0_67 = arith.constant 0 : index
    %168 = vector.load %arg5[%c0_66, %c0_67] : memref<1x2xf32, #tpu.memory_space<vmem>>, vector<1x2xf32>
    tpu.vector_store %arg5[%c0_66, %c0_67], %167 {strides = array<i32>} : memref<1x2xf32, #tpu.memory_space<vmem>>, vector<1x2xf32>,
    %cst_68 = arith.constant dense<0.000000e+00> : vector<2xf32>
    %169 = vector.multi_reduction <add>, %142, %cst_68 [0] : vector<49x2xf32> to vector<2xf32>
    %170 = vector.shape_cast %169 : vector<2xf32> to vector<1x2xf32>
    %cst_69 = arith.constant dense<0.000000e+00> : vector<2xf32>
    %171 = vector.multi_reduction <add>, %144, %cst_69 [0] : vector<49x2xf32> to vector<2xf32>
    %172 = vector.shape_cast %171 : vector<2xf32> to vector<1x2xf32>
    %cst_70 = arith.constant dense<0.000000e+00> : vector<2xf32>
    %173 = vector.multi_reduction <add>, %146, %cst_70 [0] : vector<49x2xf32> to vector<2xf32>
    %174 = vector.shape_cast %173 : vector<2xf32> to vector<1x2xf32>
    %cst_71 = arith.constant dense<0.000000e+00> : vector<2xf32>
    %175 = vector.multi_reduction <add>, %148, %cst_71 [0] : vector<49x2xf32> to vector<2xf32>
    %176 = vector.shape_cast %175 : vector<2xf32> to vector<1x2xf32>
    %177 = arith.subf %174, %170 : vector<1x2xf32>
    %cst_72 = arith.constant 5.000000e-01 : f32
    %178 = vector.broadcast %cst_72 : f32 to vector<1x2xf32>
    %179 = arith.mulf %177, %178 : vector<1x2xf32>
    %180 = arith.addf %170, %179 : vector<1x2xf32>
    %cst_73 = arith.constant 9.99999997E-7 : f32
    %181 = vector.broadcast %cst_73 : f32 to vector<1x2xf32>
    %182 = arith.addf %180, %181 : vector<1x2xf32>
    %183 = arith.subf %176, %172 : vector<1x2xf32>
    %cst_74 = arith.constant 5.000000e-01 : f32
    %184 = vector.broadcast %cst_74 : f32 to vector<1x2xf32>
    %185 = arith.mulf %183, %184 : vector<1x2xf32>
    %186 = arith.addf %172, %185 : vector<1x2xf32>
    %cst_75 = arith.constant 9.99999997E-7 : f32
    %187 = vector.broadcast %cst_75 : f32 to vector<1x2xf32>
    %188 = arith.addf %186, %187 : vector<1x2xf32>
    %189 = arith.mulf %182, %182 : vector<1x2xf32>
    %190 = arith.mulf %188, %188 : vector<1x2xf32>
    %191 = arith.addf %189, %190 : vector<1x2xf32>
    %192 = math.sqrt %191 : vector<1x2xf32>
    %c0_76 = arith.constant 0 : index
    %c0_77 = arith.constant 0 : index
    %193 = vector.load %arg6[%c0_76, %c0_77] : memref<1x2xf32, #tpu.memory_space<vmem>>, vector<1x2xf32>
    %194 = arith.addf %193, %192 : vector<1x2xf32>
    %c0_78 = arith.constant 0 : index
    %c0_79 = arith.constant 0 : index
    %195 = vector.load %arg6[%c0_78, %c0_79] : memref<1x2xf32, #tpu.memory_space<vmem>>, vector<1x2xf32>
    tpu.vector_store %arg6[%c0_78, %c0_79], %194 {strides = array<i32>} : memref<1x2xf32, #tpu.memory_space<vmem>>, vector<1x2xf32>,
    %c0_i32_80 = arith.constant 0 : i32
    %196 = arith.cmpi eq, %arg0, %c0_i32_80 : i32
    %197 = arith.extui %196 : i1 to i32
    %c0_i32_81 = arith.constant 0 : i32
    %198 = arith.cmpi ne, %197, %c0_i32_81 : i32
    scf.if %198 {
      %c0_82 = arith.constant 0 : index
      %c0_83 = arith.constant 0 : index
      %199 = vector.load %arg4[%c0_82, %c0_83] : memref<1x2xf32, #tpu.memory_space<vmem>>, vector<1x2xf32>
      %cst_84 = arith.constant dense<0.000000e+00> : vector<1xf32>
      %200 = vector.multi_reduction <add>, %199, %cst_84 [1] : vector<1x2xf32> to vector<1xf32>
      %201 = vector.shape_cast %200 : vector<1xf32> to vector<1x1xf32>
      %cst_85 = arith.constant 0.0102040814 : f32
      %202 = vector.broadcast %cst_85 : f32 to vector<1x1xf32>
      %203 = arith.mulf %201, %202 : vector<1x1xf32>
      %c0_86 = arith.constant 0 : index
      %c0_87 = arith.constant 0 : index
      %204 = vector.load %arg5[%c0_86, %c0_87] : memref<1x2xf32, #tpu.memory_space<vmem>>, vector<1x2xf32>
      %cst_88 = arith.constant dense<0.000000e+00> : vector<1xf32>
      %205 = vector.multi_reduction <add>, %204, %cst_88 [1] : vector<1x2xf32> to vector<1xf32>
      %206 = vector.shape_cast %205 : vector<1xf32> to vector<1x1xf32>
      %cst_89 = arith.constant 0.0102040814 : f32
      %207 = vector.broadcast %cst_89 : f32 to vector<1x1xf32>
      %208 = arith.mulf %206, %207 : vector<1x1xf32>
      %c0_90 = arith.constant 0 : index
      %c0_91 = arith.constant 0 : index
      %209 = vector.load %arg6[%c0_90, %c0_91] : memref<1x2xf32, #tpu.memory_space<vmem>>, vector<1x2xf32>
      %cst_92 = arith.constant dense<0.000000e+00> : vector<1xf32>
      %210 = vector.multi_reduction <add>, %209, %cst_92 [1] : vector<1x2xf32> to vector<1xf32>
      %211 = vector.shape_cast %210 : vector<1xf32> to vector<1x1xf32>
      %cst_93 = arith.constant 5.000000e-01 : f32
      %212 = vector.broadcast %cst_93 : f32 to vector<1x1xf32>
      %213 = arith.mulf %211, %212 : vector<1x1xf32>
      %cst_94 = arith.constant 5.000000e+00 : f32
      %214 = vector.broadcast %cst_94 : f32 to vector<1x1xf32>
      %215 = arith.mulf %203, %214 : vector<1x1xf32>
      %cst_95 = arith.constant 1.000000e+00 : f32
      %216 = vector.broadcast %cst_95 : f32 to vector<1x1xf32>
      %217 = arith.mulf %208, %216 : vector<1x1xf32>
      %cst_96 = arith.constant 1.000000e-01 : f32
      %218 = vector.broadcast %cst_96 : f32 to vector<1x1xf32>
      %219 = arith.mulf %213, %218 : vector<1x1xf32>
      %220 = arith.addf %215, %217 : vector<1x1xf32>
      %221 = arith.addf %220, %219 : vector<1x1xf32>
      %222 = tpu.iota {dimensions = array<i32: 1>} : vector<1x128xi32>
      %c0_i32_97 = arith.constant 0 : i32
      %223 = vector.broadcast %c0_i32_97 : i32 to vector<1x128xi32>
      %224 = arith.cmpi eq, %222, %223 : vector<1x128xi32>
      %cst_98 = arith.constant 0.000000e+00 : f32
      %225 = vector.shape_cast %221 : vector<1x1xf32> to vector<1x1xf32>
      %226 = vector.broadcast %225 : vector<1x1xf32> to vector<1x128xf32>
      %227 = vector.broadcast %cst_98 : f32 to vector<1x128xf32>
      %228 = arith.select %224, %226, %227 : vector<1x128xi1>, vector<1x128xf32>
      %c1_i32 = arith.constant 1 : i32
      %229 = vector.broadcast %c1_i32 : i32 to vector<1x128xi32>
      %230 = arith.cmpi eq, %222, %229 : vector<1x128xi32>
      %cst_99 = arith.constant 0.000000e+00 : f32
      %231 = vector.shape_cast %215 : vector<1x1xf32> to vector<1x1xf32>
      %232 = vector.broadcast %231 : vector<1x1xf32> to vector<1x128xf32>
      %233 = vector.broadcast %cst_99 : f32 to vector<1x128xf32>
      %234 = arith.select %230, %232, %233 : vector<1x128xi1>, vector<1x128xf32>
      %235 = arith.addf %228, %234 : vector<1x128xf32>
      %c2_i32 = arith.constant 2 : i32
      %236 = vector.broadcast %c2_i32 : i32 to vector<1x128xi32>
      %237 = arith.cmpi eq, %222, %236 : vector<1x128xi32>
      %cst_100 = arith.constant 0.000000e+00 : f32
      %238 = vector.shape_cast %217 : vector<1x1xf32> to vector<1x1xf32>
      %239 = vector.broadcast %238 : vector<1x1xf32> to vector<1x128xf32>
      %240 = vector.broadcast %cst_100 : f32 to vector<1x128xf32>
      %241 = arith.select %237, %239, %240 : vector<1x128xi1>, vector<1x128xf32>
      %242 = arith.addf %235, %241 : vector<1x128xf32>
      %c3_i32 = arith.constant 3 : i32
      %243 = vector.broadcast %c3_i32 : i32 to vector<1x128xi32>
      %244 = arith.cmpi eq, %222, %243 : vector<1x128xi32>
      %cst_101 = arith.constant 0.000000e+00 : f32
      %245 = vector.shape_cast %219 : vector<1x1xf32> to vector<1x1xf32>
      %246 = vector.broadcast %245 : vector<1x1xf32> to vector<1x128xf32>
      %247 = vector.broadcast %cst_101 : f32 to vector<1x128xf32>
      %248 = arith.select %244, %246, %247 : vector<1x128xi1>, vector<1x128xf32>
      %249 = arith.addf %242, %248 : vector<1x128xf32>
      %c0_102 = arith.constant 0 : index
      %c0_103 = arith.constant 0 : index
      %250 = vector.load %arg3[%c0_102, %c0_103] : memref<1x128xf32, #tpu.memory_space<vmem>>, vector<1x128xf32>
      tpu.vector_store %arg3[%c0_102, %c0_103], %249 {strides = array<i32>} : memref<1x128xf32, #tpu.memory_space<vmem>>, vector<1x128xf32>,
    } else {
    }
    return
  }
  func.func @transform_0(%arg0: i32) -> (i32, i32, i32) {
    %c0_i32 = arith.constant 0 : i32
    %c0_i32_0 = arith.constant 0 : i32
    %c0_i32_1 = arith.constant 0 : i32
    return %c0_i32, %c0_i32_0, %arg0 : i32, i32, i32
  }
  func.func @transform_1(%arg0: i32) -> (i32, i32, i32) {
    %c0_i32 = arith.constant 0 : i32
    %c0_i32_0 = arith.constant 0 : i32
    %c0_i32_1 = arith.constant 0 : i32
    return %c0_i32, %c0_i32_0, %arg0 : i32, i32, i32
  }
  func.func @transform_2(%arg0: i32) -> (i32, i32) {
    %c0_i32 = arith.constant 0 : i32
    %c0_i32_0 = arith.constant 0 : i32
    %c0_i32_1 = arith.constant 0 : i32
    return %c0_i32, %c0_i32_0 : i32, i32
  }
}

</mosaic_0001>

<llo_original>
// kernel: tpu_custom_call.1
$region0: #{tpu_custom_call.1}
  #allocation0 [shape = 'u32[]', space=smem, size = 0x4, offset = 0x4, fixed_abs, tag = 'smem constant byte address 0x4 - core index']
  #allocation1 [shape = 'u32[144,128]{1,0:T(1,128)}', space=vmem, size = 0x12000, scoped, tag = 'internal scratch']
  #allocation2 [shape = 'f32[1,2]{1,0:T(1,128)}', space=vmem, size = 0x200, scoped, tag = 'scratch operand']
  #allocation3 [shape = 'f32[1,2]{1,0:T(1,128)}', space=vmem, size = 0x200, scoped, tag = 'scratch operand']
  #allocation4 [shape = 'f32[1,2]{1,0:T(1,128)}', space=vmem, size = 0x200, scoped, tag = 'scratch operand']
  %s0 = inlined_call_operand.vmem [shape: f32[10,49,2], index: 0, kind: input, shape index: {}]
  %s1 = inlined_call_operand.vmem [shape: f32[5,49,2], index: 1, kind: input, shape index: {}]
  %s2 = inlined_call_operand.hbm [shape: f32[1,128], index: 2, kind: output, shape index: {}]
  %s3 = sld [smem:[#allocation0]]
  $region26: #{tpu_custom_call.1} parent=0
    _
  %s5 = ssub.s32 1, %s3
  %s6 = scalar_select 0, %s5, %s3
  $region1: #{tpu_custom_call.1} parent=0
    #allocation5 [shape = 'u8[512]{0}', space=vmem, size = 0x400, scoped, tag = 'output window, operand 0, single buffered']
    #allocation6 [shape = 's32[1]{0}', space=sflag, size = 0x4, scoped, tag = 'scoped memory for tpu_custom_call.1']
    %7 = vsyncpa [#allocation6], 0
    // Predicated region
    $region2: #{tpu_custom_call.1} parent=1 // pred_check
      _
    $region3: #{tpu_custom_call.1} parent=1 // pred_check_branch
      %9 = sbr.rel (0) target = $region5
    $region4: #{tpu_custom_call.1} parent=1 // pred_region
      _
    $region5: #{tpu_custom_call.1} parent=1 // pred_fallthru
      _
    // Predicated region
    $region6: #{tpu_custom_call.1} parent=1 // pred_check
      _
    $region7: #{tpu_custom_call.1} parent=1 // pred_check_branch
      %11 = sbr.rel (0) target = $region9
    $region8: #{tpu_custom_call.1} parent=1 // pred_region
      _
    $region9: #{tpu_custom_call.1} parent=1 // pred_fallthru
      _
    %p12 = scmp.eq.s32.totalorder 0, 0
    // Predicated region
    $region10: #{tpu_custom_call.1} parent=1 // pred_check
      %p13 = pneg %p12
    $region11: #{tpu_custom_call.1} parent=1 // pred_check_branch
      %15 = sbr.rel (%p13) target = $region13
    $region12: #{tpu_custom_call.1} parent=1 // pred_region
      %vm16 = vcmask 8192
      %17 = vst.msk [vmem:[#allocation2] sm:$0x1] %vm16, 0.0
      %18 = vst.msk [vmem:[#allocation3] sm:$0x1] %vm16, 0.0
      %19 = vst.msk [vmem:[#allocation4] sm:$0x1] %vm16, 0.0
    $region13: #{tpu_custom_call.1} parent=1 // pred_fallthru
      _
    %v20 = vld [vmem:[%s1] sm:$0xff]
    %v21 = vld [vmem:[%s1 + $0x8] sm:$0xff]
    %v22 = vld [vmem:[%s1 + $0x10] sm:$0xff]
    %v23 = vld [vmem:[%s1 + $0x18] sm:$0xff]
    %v24 = vld [vmem:[%s1 + $0x20] sm:$0xff]
    %v25 = vld [vmem:[%s1 + $0x28] sm:$0xff]
    %v26 = vld [vmem:[%s1 + $0x30] sm:$0x1]
    %s27 = scalar_lea.vmem %s1, 56
    %v28 = vld [vmem:[%s27] sm:$0xff]
    %v29 = vld [vmem:[%s27 + $0x8] sm:$0xff]
    %v30 = vld [vmem:[%s27 + $0x10] sm:$0xff]
    %v31 = vld [vmem:[%s27 + $0x18] sm:$0xff]
    %v32 = vld [vmem:[%s27 + $0x20] sm:$0xff]
    %v33 = vld [vmem:[%s27 + $0x28] sm:$0xff]
    %v34 = vld [vmem:[%s27 + $0x30] sm:$0x1]
    %s35 = scalar_lea.vmem %s1, 112
    %v36 = vld [vmem:[%s35] sm:$0xff]
    %v37 = vld [vmem:[%s35 + $0x8] sm:$0xff]
    %v38 = vld [vmem:[%s35 + $0x10] sm:$0xff]
    %v39 = vld [vmem:[%s35 + $0x18] sm:$0xff]
    %v40 = vld [vmem:[%s35 + $0x20] sm:$0xff]
    %v41 = vld [vmem:[%s35 + $0x28] sm:$0xff]
    %v42 = vld [vmem:[%s35 + $0x30] sm:$0x1]
    %s43 = scalar_lea.vmem %s1, 168
    %v44 = vld [vmem:[%s43] sm:$0xff]
    %v45 = vld [vmem:[%s43 + $0x8] sm:$0xff]
    %v46 = vld [vmem:[%s43 + $0x10] sm:$0xff]
    %v47 = vld [vmem:[%s43 + $0x18] sm:$0xff]
    %v48 = vld [vmem:[%s43 + $0x20] sm:$0xff]
    %v49 = vld [vmem:[%s43 + $0x28] sm:$0xff]
    %v50 = vld [vmem:[%s43 + $0x30] sm:$0x1]
    %s51 = scalar_lea.vmem %s1, 224
    %v52 = vld [vmem:[%s51] sm:$0xff]
    %v53 = vld [vmem:[%s51 + $0x8] sm:$0xff]
    %v54 = vld [vmem:[%s51 + $0x10] sm:$0xff]
    %v55 = vld [vmem:[%s51 + $0x18] sm:$0xff]
    %v56 = vld [vmem:[%s51 + $0x20] sm:$0xff]
    %v57 = vld [vmem:[%s51 + $0x28] sm:$0xff]
    %v58 = vld [vmem:[%s51 + $0x30] sm:$0x1]
    %s59 = scalar_lea.vmem %s0, 56
    %v60 = vld [vmem:[%s59] sm:$0xff]
    %v61 = vld [vmem:[%s59 + $0x8] sm:$0xff]
    %v62 = vld [vmem:[%s59 + $0x10] sm:$0xff]
    %v63 = vld [vmem:[%s59 + $0x18] sm:$0xff]
    %v64 = vld [vmem:[%s59 + $0x20] sm:$0xff]
    %v65 = vld [vmem:[%s59 + $0x28] sm:$0xff]
    %v66 = vld [vmem:[%s59 + $0x30] sm:$0x1]
    %s67 = scalar_lea.vmem %s0, 112
    %v68 = vld [vmem:[%s67] sm:$0xff]
    %v69 = vld [vmem:[%s67 + $0x8] sm:$0xff]
    %v70 = vld [vmem:[%s67 + $0x10] sm:$0xff]
    %v71 = vld [vmem:[%s67 + $0x18] sm:$0xff]
    %v72 = vld [vmem:[%s67 + $0x20] sm:$0xff]
    %v73 = vld [vmem:[%s67 + $0x28] sm:$0xff]
    %v74 = vld [vmem:[%s67 + $0x30] sm:$0x1]
    %s75 = scalar_lea.vmem %s0, 168
    %v76 = vld [vmem:[%s75] sm:$0xff]
    %v77 = vld [vmem:[%s75 + $0x8] sm:$0xff]
    %v78 = vld [vmem:[%s75 + $0x10] sm:$0xff]
    %v79 = vld [vmem:[%s75 + $0x18] sm:$0xff]
    %v80 = vld [vmem:[%s75 + $0x20] sm:$0xff]
    %v81 = vld [vmem:[%s75 + $0x28] sm:$0xff]
    %v82 = vld [vmem:[%s75 + $0x30] sm:$0x1]
    %s83 = scalar_lea.vmem %s0, 224
    %v84 = vld [vmem:[%s83] sm:$0xff]
    %v85 = vld [vmem:[%s83 + $0x8] sm:$0xff]
    %v86 = vld [vmem:[%s83 + $0x10] sm:$0xff]
    %v87 = vld [vmem:[%s83 + $0x18] sm:$0xff]
    %v88 = vld [vmem:[%s83 + $0x20] sm:$0xff]
    %v89 = vld [vmem:[%s83 + $0x28] sm:$0xff]
    %v90 = vld [vmem:[%s83 + $0x30] sm:$0x1]
    %v91 = vsub.f32 %v76, %v60
    %v92 = vsub.f32 %v77, %v61
    %v93 = vsub.f32 %v78, %v62
    %v94 = vsub.f32 %v79, %v63
    %v95 = vsub.f32 %v80, %v64
    %v96 = vsub.f32 %v81, %v65
    %v97 = vsub.f32 %v82, %v66
    %v98 = vmul.f32 %v91, 0.5
    %v99 = vmul.f32 %v92, 0.5
    %v100 = vmul.f32 %v93, 0.5
    %v101 = vmul.f32 %v94, 0.5
    %v102 = vmul.f32 %v95, 0.5
    %v103 = vmul.f32 %v96, 0.5
    %v104 = vmul.f32 %v97, 0.5
    %v105 = vadd.f32 %v60, %v98
    %v106 = vadd.f32 %v61, %v99
    %v107 = vadd.f32 %v62, %v100
    %v108 = vadd.f32 %v63, %v101
    %v109 = vadd.f32 %v64, %v102
    %v110 = vadd.f32 %v65, %v103
    %v111 = vadd.f32 %v66, %v104
    %v112 = vsub.f32 %v84, %v68
    %v113 = vsub.f32 %v85, %v69
    %v114 = vsub.f32 %v86, %v70
    %v115 = vsub.f32 %v87, %v71
    %v116 = vsub.f32 %v88, %v72
    %v117 = vsub.f32 %v89, %v73
    %v118 = vsub.f32 %v90, %v74
    %v119 = vmul.f32 %v112, 0.5
    %v120 = vmul.f32 %v113, 0.5
    %v121 = vmul.f32 %v114, 0.5
    %v122 = vmul.f32 %v115, 0.5
    %v123 = vmul.f32 %v116, 0.5
    %v124 = vmul.f32 %v117, 0.5
    %v125 = vmul.f32 %v118, 0.5
    %v126 = vadd.f32 %v68, %v119
    %v127 = vadd.f32 %v69, %v120
    %v128 = vadd.f32 %v70, %v121
    %v129 = vadd.f32 %v71, %v122
    %v130 = vadd.f32 %v72, %v123
    %v131 = vadd.f32 %v73, %v124
    %v132 = vadd.f32 %v74, %v125
    %v133 = vsub.f32 %v105, 0.04464286
    %v134 = vsub.f32 %v106, 0.04464286
    %v135 = vsub.f32 %v107, 0.04464286
    %v136 = vsub.f32 %v108, 0.04464286
    %v137 = vsub.f32 %v109, 0.04464286
    %v138 = vsub.f32 %v110, 0.04464286
    %v139 = vsub.f32 %v111, 0.04464286
    %v140 = vsub.f32 %v126, 0.04464286
    %v141 = vsub.f32 %v127, 0.04464286
    %v142 = vsub.f32 %v128, 0.04464286
    %v143 = vsub.f32 %v129, 0.04464286
    %v144 = vsub.f32 %v130, 0.04464286
    %v145 = vsub.f32 %v131, 0.04464286
    %v146 = vsub.f32 %v132, 0.04464286
    %v147 = vadd.f32 %v105, 0.04464286
    %v148 = vadd.f32 %v106, 0.04464286
    %v149 = vadd.f32 %v107, 0.04464286
    %v150 = vadd.f32 %v108, 0.04464286
    %v151 = vadd.f32 %v109, 0.04464286
    %v152 = vadd.f32 %v110, 0.04464286
    %v153 = vadd.f32 %v111, 0.04464286
    %v154 = vadd.f32 %v126, 0.04464286
    %v155 = vadd.f32 %v127, 0.04464286
    %v156 = vadd.f32 %v128, 0.04464286
    %v157 = vadd.f32 %v129, 0.04464286
    %v158 = vadd.f32 %v130, 0.04464286
    %v159 = vadd.f32 %v131, 0.04464286
    %v160 = vadd.f32 %v132, 0.04464286
    %s161 = scalar_lea.vmem %s0, 336
    %v162 = vld [vmem:[%s161] sm:$0xff]
    %v163 = vld [vmem:[%s161 + $0x8] sm:$0xff]
    %v164 = vld [vmem:[%s161 + $0x10] sm:$0xff]
    %v165 = vld [vmem:[%s161 + $0x18] sm:$0xff]
    %v166 = vld [vmem:[%s161 + $0x20] sm:$0xff]
    %v167 = vld [vmem:[%s161 + $0x28] sm:$0xff]
    %v168 = vld [vmem:[%s161 + $0x30] sm:$0x1]
    %s169 = scalar_lea.vmem %s0, 392
    %v170 = vld [vmem:[%s169] sm:$0xff]
    %v171 = vld [vmem:[%s169 + $0x8] sm:$0xff]
    %v172 = vld [vmem:[%s169 + $0x10] sm:$0xff]
    %v173 = vld [vmem:[%s169 + $0x18] sm:$0xff]
    %v174 = vld [vmem:[%s169 + $0x20] sm:$0xff]
    %v175 = vld [vmem:[%s169 + $0x28] sm:$0xff]
    %v176 = vld [vmem:[%s169 + $0x30] sm:$0x1]
    %s177 = scalar_lea.vmem %s0, 448
    %v178 = vld [vmem:[%s177] sm:$0xff]
    %v179 = vld [vmem:[%s177 + $0x8] sm:$0xff]
    %v180 = vld [vmem:[%s177 + $0x10] sm:$0xff]
    %v181 = vld [vmem:[%s177 + $0x18] sm:$0xff]
    %v182 = vld [vmem:[%s177 + $0x20] sm:$0xff]
    %v183 = vld [vmem:[%s177 + $0x28] sm:$0xff]
    %v184 = vld [vmem:[%s177 + $0x30] sm:$0x1]
    %s185 = scalar_lea.vmem %s0, 504
    %v186 = vld [vmem:[%s185] sm:$0xff]
    %v187 = vld [vmem:[%s185 + $0x8] sm:$0xff]
    %v188 = vld [vmem:[%s185 + $0x10] sm:$0xff]
    %v189 = vld [vmem:[%s185 + $0x18] sm:$0xff]
    %v190 = vld [vmem:[%s185 + $0x20] sm:$0xff]
    %v191 = vld [vmem:[%s185 + $0x28] sm:$0xff]
    %v192 = vld [vmem:[%s185 + $0x30] sm:$0x1]
    %v193 = vsub.f32 %v178, %v162
    %v194 = vsub.f32 %v179, %v163
    %v195 = vsub.f32 %v180, %v164
    %v196 = vsub.f32 %v181, %v165
    %v197 = vsub.f32 %v182, %v166
    %v198 = vsub.f32 %v183, %v167
    %v199 = vsub.f32 %v184, %v168
    %v200 = vmul.f32 %v193, 0.5
    %v201 = vmul.f32 %v194, 0.5
    %v202 = vmul.f32 %v195, 0.5
    %v203 = vmul.f32 %v196, 0.5
    %v204 = vmul.f32 %v197, 0.5
    %v205 = vmul.f32 %v198, 0.5
    %v206 = vmul.f32 %v199, 0.5
    %v207 = vadd.f32 %v162, %v200
    %v208 = vadd.f32 %v163, %v201
    %v209 = vadd.f32 %v164, %v202
    %v210 = vadd.f32 %v165, %v203
    %v211 = vadd.f32 %v166, %v204
    %v212 = vadd.f32 %v167, %v205
    %v213 = vadd.f32 %v168, %v206
    %v214 = vsub.f32 %v186, %v170
    %v215 = vsub.f32 %v187, %v171
    %v216 = vsub.f32 %v188, %v172
    %v217 = vsub.f32 %v189, %v173
    %v218 = vsub.f32 %v190, %v174
    %v219 = vsub.f32 %v191, %v175
    %v220 = vsub.f32 %v192, %v176
    %v221 = vmul.f32 %v214, 0.5
    %v222 = vmul.f32 %v215, 0.5
    %v223 = vmul.f32 %v216, 0.5
    %v224 = vmul.f32 %v217, 0.5
    %v225 = vmul.f32 %v218, 0.5
    %v226 = vmul.f32 %v219, 0.5
    %v227 = vmul.f32 %v220, 0.5
    %v228 = vadd.f32 %v170, %v221
    %v229 = vadd.f32 %v171, %v222
    %v230 = vadd.f32 %v172, %v223
    %v231 = vadd.f32 %v173, %v224
    %v232 = vadd.f32 %v174, %v225
    %v233 = vadd.f32 %v175, %v226
    %v234 = vadd.f32 %v176, %v227
    %v235 = vsub.f32 %v207, 0.04464286
    %v236 = vsub.f32 %v208, 0.04464286
    %v237 = vsub.f32 %v209, 0.04464286
    %v238 = vsub.f32 %v210, 0.04464286
    %v239 = vsub.f32 %v211, 0.04464286
    %v240 = vsub.f32 %v212, 0.04464286
    %v241 = vsub.f32 %v213, 0.04464286
    %v242 = vsub.f32 %v228, 0.04464286
    %v243 = vsub.f32 %v229, 0.04464286
    %v244 = vsub.f32 %v230, 0.04464286
    %v245 = vsub.f32 %v231, 0.04464286
    %v246 = vsub.f32 %v232, 0.04464286
    %v247 = vsub.f32 %v233, 0.04464286
    %v248 = vsub.f32 %v234, 0.04464286
    %v249 = vadd.f32 %v207, 0.04464286
    %v250 = vadd.f32 %v208, 0.04464286
    %v251 = vadd.f32 %v209, 0.04464286
    %v252 = vadd.f32 %v210, 0.04464286
    %v253 = vadd.f32 %v211, 0.04464286
    %v254 = vadd.f32 %v212, 0.04464286
    %v255 = vadd.f32 %v213, 0.04464286
    %v256 = vadd.f32 %v228, 0.04464286
    %v257 = vadd.f32 %v229, 0.04464286
    %v258 = vadd.f32 %v230, 0.04464286
    %v259 = vadd.f32 %v231, 0.04464286
    %v260 = vadd.f32 %v232, 0.04464286
    %v261 = vadd.f32 %v233, 0.04464286
    %v262 = vadd.f32 %v234, 0.04464286
    %v263 = vmax.f32 %v133, %v28
    %v264 = vmax.f32 %v134, %v29
    %v265 = vmax.f32 %v135, %v30
    %v266 = vmax.f32 %v136, %v31
    %v267 = vmax.f32 %v137, %v32
    %v268 = vmax.f32 %v138, %v33
    %v269 = vmax.f32 %v139, %v34
    %v270 = vmax.f32 %v140, %v36
    %v271 = vmax.f32 %v141, %v37
    %v272 = vmax.f32 %v142, %v38
    %v273 = vmax.f32 %v143, %v39
    %v274 = vmax.f32 %v144, %v40
    %v275 = vmax.f32 %v145, %v41
    %v276 = vmax.f32 %v146, %v42
    %v277 = vmin.f32 %v147, %v44
    %v278 = vmin.f32 %v148, %v45
    %v279 = vmin.f32 %v149, %v46
    %v280 = vmin.f32 %v150, %v47
    %v281 = vmin.f32 %v151, %v48
    %v282 = vmin.f32 %v152, %v49
    %v283 = vmin.f32 %v153, %v50
    %v284 = vmin.f32 %v154, %v52
    %v285 = vmin.f32 %v155, %v53
    %v286 = vmin.f32 %v156, %v54
    %v287 = vmin.f32 %v157, %v55
    %v288 = vmin.f32 %v158, %v56
    %v289 = vmin.f32 %v159, %v57
    %v290 = vmin.f32 %v160, %v58
    %v291 = vsub.f32 %v277, %v263
    %v292 = vsub.f32 %v278, %v264
    %v293 = vsub.f32 %v279, %v265
    %v294 = vsub.f32 %v280, %v266
    %v295 = vsub.f32 %v281, %v267
    %v296 = vsub.f32 %v282, %v268
    %v297 = vsub.f32 %v283, %v269
    %v298 = vmax.f32 %v291, 0.0
    %v299 = vmax.f32 %v292, 0.0
    %v300 = vmax.f32 %v293, 0.0
    %v301 = vmax.f32 %v294, 0.0
    %v302 = vmax.f32 %v295, 0.0
    %v303 = vmax.f32 %v296, 0.0
    %v304 = vmax.f32 %v297, 0.0
    %v305 = vsub.f32 %v284, %v270
    %v306 = vsub.f32 %v285, %v271
    %v307 = vsub.f32 %v286, %v272
    %v308 = vsub.f32 %v287, %v273
    %v309 = vsub.f32 %v288, %v274
    %v310 = vsub.f32 %v289, %v275
    %v311 = vsub.f32 %v290, %v276
    %v312 = vmax.f32 %v305, 0.0
    %v313 = vmax.f32 %v306, 0.0
    %v314 = vmax.f32 %v307, 0.0
    %v315 = vmax.f32 %v308, 0.0
    %v316 = vmax.f32 %v309, 0.0
    %v317 = vmax.f32 %v310, 0.0
    %v318 = vmax.f32 %v311, 0.0
    %v319 = vmul.f32 %v298, %v312
    %v320 = vmul.f32 %v299, %v313
    %v321 = vmul.f32 %v300, %v314
    %v322 = vmul.f32 %v301, %v315
    %v323 = vmul.f32 %v302, %v316
    %v324 = vmul.f32 %v303, %v317
    %v325 = vmul.f32 %v304, %v318
    %v326 = vsub.f32 %v147, %v133
    %v327 = vsub.f32 %v148, %v134
    %v328 = vsub.f32 %v149, %v135
    %v329 = vsub.f32 %v150, %v136
    %v330 = vsub.f32 %v151, %v137
    %v331 = vsub.f32 %v152, %v138
    %v332 = vsub.f32 %v153, %v139
    %v333 = vsub.f32 %v154, %v140
    %v334 = vsub.f32 %v155, %v141
    %v335 = vsub.f32 %v156, %v142
    %v336 = vsub.f32 %v157, %v143
    %v337 = vsub.f32 %v158, %v144
    %v338 = vsub.f32 %v159, %v145
    %v339 = vsub.f32 %v160, %v146
    %v340 = vmul.f32 %v326, %v333
    %v341 = vmul.f32 %v327, %v334
    %v342 = vmul.f32 %v328, %v335
    %v343 = vmul.f32 %v329, %v336
    %v344 = vmul.f32 %v330, %v337
    %v345 = vmul.f32 %v331, %v338
    %v346 = vmul.f32 %v332, %v339
    %v347 = vand.u32 2147483647, %v340
    %v348 = vand.u32 2147483647, %v341
    %v349 = vand.u32 2147483647, %v342
    %v350 = vand.u32 2147483647, %v343
    %v351 = vand.u32 2147483647, %v344
    %v352 = vand.u32 2147483647, %v345
    %v353 = vand.u32 2147483647, %v346
    %v354 = vsub.f32 %v44, %v28
    %v355 = vsub.f32 %v45, %v29
    %v356 = vsub.f32 %v46, %v30
    %v357 = vsub.f32 %v47, %v31
    %v358 = vsub.f32 %v48, %v32
    %v359 = vsub.f32 %v49, %v33
    %v360 = vsub.f32 %v50, %v34
    %v361 = vsub.f32 %v52, %v36
    %v362 = vsub.f32 %v53, %v37
    %v363 = vsub.f32 %v54, %v38
    %v364 = vsub.f32 %v55, %v39
    %v365 = vsub.f32 %v56, %v40
    %v366 = vsub.f32 %v57, %v41
    %v367 = vsub.f32 %v58, %v42
    %v368 = vmul.f32 %v354, %v361
    %v369 = vmul.f32 %v355, %v362
    %v370 = vmul.f32 %v356, %v363
    %v371 = vmul.f32 %v357, %v364
    %v372 = vmul.f32 %v358, %v365
    %v373 = vmul.f32 %v359, %v366
    %v374 = vmul.f32 %v360, %v367
    %v375 = vand.u32 2147483647, %v368
    %v376 = vand.u32 2147483647, %v369
    %v377 = vand.u32 2147483647, %v370
    %v378 = vand.u32 2147483647, %v371
    %v379 = vand.u32 2147483647, %v372
    %v380 = vand.u32 2147483647, %v373
    %v381 = vand.u32 2147483647, %v374
    %v382 = vadd.f32 %v347, %v375
    %v383 = vadd.f32 %v348, %v376
    %v384 = vadd.f32 %v349, %v377
    %v385 = vadd.f32 %v350, %v378
    %v386 = vadd.f32 %v351, %v379
    %v387 = vadd.f32 %v352, %v380
    %v388 = vadd.f32 %v353, %v381
    %v389 = vsub.f32 %v382, %v319
    %v390 = vsub.f32 %v383, %v320
    %v391 = vsub.f32 %v384, %v321
    %v392 = vsub.f32 %v385, %v322
    %v393 = vsub.f32 %v386, %v323
    %v394 = vsub.f32 %v387, %v324
    %v395 = vsub.f32 %v388, %v325
    %v396 = vadd.f32 %v389, 1e-06
    %v397 = vadd.f32 %v390, 1e-06
    %v398 = vadd.f32 %v391, 1e-06
    %v399 = vadd.f32 %v392, 1e-06
    %v400 = vadd.f32 %v393, 1e-06
    %v401 = vadd.f32 %v394, 1e-06
    %v402 = vadd.f32 %v395, 1e-06
    %v403 = vmax.f32 %v235, %v28
    %v404 = vmax.f32 %v236, %v29
    %v405 = vmax.f32 %v237, %v30
    %v406 = vmax.f32 %v238, %v31
    %v407 = vmax.f32 %v239, %v32
    %v408 = vmax.f32 %v240, %v33
    %v409 = vmax.f32 %v241, %v34
    %v410 = vmax.f32 %v242, %v36
    %v411 = vmax.f32 %v243, %v37
    %v412 = vmax.f32 %v244, %v38
    %v413 = vmax.f32 %v245, %v39
    %v414 = vmax.f32 %v246, %v40
    %v415 = vmax.f32 %v247, %v41
    %v416 = vmax.f32 %v248, %v42
    %v417 = vmin.f32 %v249, %v44
    %v418 = vmin.f32 %v250, %v45
    %v419 = vmin.f32 %v251, %v46
    %v420 = vmin.f32 %v252, %v47
    %v421 = vmin.f32 %v253, %v48
    %v422 = vmin.f32 %v254, %v49
    %v423 = vmin.f32 %v255, %v50
    %v424 = vmin.f32 %v256, %v52
    %v425 = vmin.f32 %v257, %v53
    %v426 = vmin.f32 %v258, %v54
    %v427 = vmin.f32 %v259, %v55
    %v428 = vmin.f32 %v260, %v56
    %v429 = vmin.f32 %v261, %v57
    %v430 = vmin.f32 %v262, %v58
    %v431 = vsub.f32 %v417, %v403
    %v432 = vsub.f32 %v418, %v404
    %v433 = vsub.f32 %v419, %v405
    %v434 = vsub.f32 %v420, %v406
    %v435 = vsub.f32 %v421, %v407
    %v436 = vsub.f32 %v422, %v408
    %v437 = vsub.f32 %v423, %v409
    %v438 = vmax.f32 %v431, 0.0
    %v439 = vmax.f32 %v432, 0.0
    %v440 = vmax.f32 %v433, 0.0
    %v441 = vmax.f32 %v434, 0.0
    %v442 = vmax.f32 %v435, 0.0
    %v443 = vmax.f32 %v436, 0.0
    %v444 = vmax.f32 %v437, 0.0
    %v445 = vsub.f32 %v424, %v410
    %v446 = vsub.f32 %v425, %v411
    %v447 = vsub.f32 %v426, %v412
    %v448 = vsub.f32 %v427, %v413
    %v449 = vsub.f32 %v428, %v414
    %v450 = vsub.f32 %v429, %v415
    %v451 = vsub.f32 %v430, %v416
    %v452 = vmax.f32 %v445, 0.0
    %v453 = vmax.f32 %v446, 0.0
    %v454 = vmax.f32 %v447, 0.0
    %v455 = vmax.f32 %v448, 0.0
    %v456 = vmax.f32 %v449, 0.0
    %v457 = vmax.f32 %v450, 0.0
    %v458 = vmax.f32 %v451, 0.0
    %v459 = vmul.f32 %v438, %v452
    %v460 = vmul.f32 %v439, %v453
    %v461 = vmul.f32 %v440, %v454
    %v462 = vmul.f32 %v441, %v455
    %v463 = vmul.f32 %v442, %v456
    %v464 = vmul.f32 %v443, %v457
    %v465 = vmul.f32 %v444, %v458
    %v466 = vsub.f32 %v249, %v235
    %v467 = vsub.f32 %v250, %v236
    %v468 = vsub.f32 %v251, %v237
    %v469 = vsub.f32 %v252, %v238
    %v470 = vsub.f32 %v253, %v239
    %v471 = vsub.f32 %v254, %v240
    %v472 = vsub.f32 %v255, %v241
    %v473 = vsub.f32 %v256, %v242
    %v474 = vsub.f32 %v257, %v243
    %v475 = vsub.f32 %v258, %v244
    %v476 = vsub.f32 %v259, %v245
    %v477 = vsub.f32 %v260, %v246
    %v478 = vsub.f32 %v261, %v247
    %v479 = vsub.f32 %v262, %v248
    %v480 = vmul.f32 %v466, %v473
    %v481 = vmul.f32 %v467, %v474
    %v482 = vmul.f32 %v468, %v475
    %v483 = vmul.f32 %v469, %v476
    %v484 = vmul.f32 %v470, %v477
    %v485 = vmul.f32 %v471, %v478
    %v486 = vmul.f32 %v472, %v479
    %v487 = vand.u32 2147483647, %v480
    %v488 = vand.u32 2147483647, %v481
    %v489 = vand.u32 2147483647, %v482
    %v490 = vand.u32 2147483647, %v483
    %v491 = vand.u32 2147483647, %v484
    %v492 = vand.u32 2147483647, %v485
    %v493 = vand.u32 2147483647, %v486
    %v494 = vadd.f32 %v487, %v375
    %v495 = vadd.f32 %v488, %v376
    %v496 = vadd.f32 %v489, %v377
    %v497 = vadd.f32 %v490, %v378
    %v498 = vadd.f32 %v491, %v379
    %v499 = vadd.f32 %v492, %v380
    %v500 = vadd.f32 %v493, %v381
    %v501 = vsub.f32 %v494, %v459
    %v502 = vsub.f32 %v495, %v460
    %v503 = vsub.f32 %v496, %v461
    %v504 = vsub.f32 %v497, %v462
    %v505 = vsub.f32 %v498, %v463
    %v506 = vsub.f32 %v499, %v464
    %v507 = vsub.f32 %v500, %v465
    %v508 = vadd.f32 %v501, 1e-06
    %v509 = vadd.f32 %v502, 1e-06
    %v510 = vadd.f32 %v503, 1e-06
    %v511 = vadd.f32 %v504, 1e-06
    %v512 = vadd.f32 %v505, 1e-06
    %v513 = vadd.f32 %v506, 1e-06
    %v514 = vadd.f32 %v507, 1e-06
    %v515 = vmul.f32 %v459, %v396
    %v516 = vmul.f32 %v460, %v397
    %v517 = vmul.f32 %v461, %v398
    %v518 = vmul.f32 %v462, %v399
    %v519 = vmul.f32 %v463, %v400
    %v520 = vmul.f32 %v464, %v401
    %v521 = vmul.f32 %v465, %v402
    %v522 = vmul.f32 %v319, %v508
    %v523 = vmul.f32 %v320, %v509
    %v524 = vmul.f32 %v321, %v510
    %v525 = vmul.f32 %v322, %v511
    %v526 = vmul.f32 %v323, %v512
    %v527 = vmul.f32 %v324, %v513
    %v528 = vmul.f32 %v325, %v514
    %vm529 = vcmp.gt.f32.partialorder %v515, %v522
    %vm530 = vcmp.gt.f32.partialorder %v516, %v523
    %vm531 = vcmp.gt.f32.partialorder %v517, %v524
    %vm532 = vcmp.gt.f32.partialorder %v518, %v525
    %vm533 = vcmp.gt.f32.partialorder %v519, %v526
    %vm534 = vcmp.gt.f32.partialorder %v520, %v527
    %vm535 = vcmp.gt.f32.partialorder %v521, %v528
    %v536 = vsel %vm529, 1, 0
    %v537 = vsel %vm530, 1, 0
    %v538 = vsel %vm531, 1, 0
    %v539 = vsel %vm532, 1, 0
    %v540 = vsel %vm533, 1, 0
    %v541 = vsel %vm534, 1, 0
    %v542 = vsel %vm535, 1, 0
    %v543 = vcvt.s32.f32 %v536
    %v544 = vcvt.s32.f32 %v537
    %v545 = vcvt.s32.f32 %v538
    %v546 = vcvt.s32.f32 %v539
    %v547 = vcvt.s32.f32 %v540
    %v548 = vcvt.s32.f32 %v541
    %v549 = vcvt.s32.f32 %v542
    %v550 = vmul.f32 %v543, %v235
    %v551 = vmul.f32 %v544, %v236
    %v552 = vmul.f32 %v545, %v237
    %v553 = vmul.f32 %v546, %v238
    %v554 = vmul.f32 %v547, %v239
    %v555 = vmul.f32 %v548, %v240
    %v556 = vmul.f32 %v549, %v241
    %v557 = vsub.f32 1.0, %v543
    %v558 = vsub.f32 1.0, %v544
    %v559 = vsub.f32 1.0, %v545
    %v560 = vsub.f32 1.0, %v546
    %v561 = vsub.f32 1.0, %v547
    %v562 = vsub.f32 1.0, %v548
    %v563 = vsub.f32 1.0, %v549
    %v564 = vmul.f32 %v557, %v133
    %v565 = vmul.f32 %v558, %v134
    %v566 = vmul.f32 %v559, %v135
    %v567 = vmul.f32 %v560, %v136
    %v568 = vmul.f32 %v561, %v137
    %v569 = vmul.f32 %v562, %v138
    %v570 = vmul.f32 %v563, %v139
    %v571 = vadd.f32 %v550, %v564
    %v572 = vadd.f32 %v551, %v565
    %v573 = vadd.f32 %v552, %v566
    %v574 = vadd.f32 %v553, %v567
    %v575 = vadd.f32 %v554, %v568
    %v576 = vadd.f32 %v555, %v569
    %v577 = vadd.f32 %v556, %v570
    %v578 = vmul.f32 %v543, %v242
    %v579 = vmul.f32 %v544, %v243
    %v580 = vmul.f32 %v545, %v244
    %v581 = vmul.f32 %v546, %v245
    %v582 = vmul.f32 %v547, %v246
    %v583 = vmul.f32 %v548, %v247
    %v584 = vmul.f32 %v549, %v248
    %v585 = vmul.f32 %v557, %v140
    %v586 = vmul.f32 %v558, %v141
    %v587 = vmul.f32 %v559, %v142
    %v588 = vmul.f32 %v560, %v143
    %v589 = vmul.f32 %v561, %v144
    %v590 = vmul.f32 %v562, %v145
    %v591 = vmul.f32 %v563, %v146
    %v592 = vadd.f32 %v578, %v585
    %v593 = vadd.f32 %v579, %v586
    %v594 = vadd.f32 %v580, %v587
    %v595 = vadd.f32 %v581, %v588
    %v596 = vadd.f32 %v582, %v589
    %v597 = vadd.f32 %v583, %v590
    %v598 = vadd.f32 %v584, %v591
    %v599 = vmul.f32 %v543, %v249
    %v600 = vmul.f32 %v544, %v250
    %v601 = vmul.f32 %v545, %v251
    %v602 = vmul.f32 %v546, %v252
    %v603 = vmul.f32 %v547, %v253
    %v604 = vmul.f32 %v548, %v254
    %v605 = vmul.f32 %v549, %v255
    %v606 = vmul.f32 %v557, %v147
    %v607 = vmul.f32 %v558, %v148
    %v608 = vmul.f32 %v559, %v149
    %v609 = vmul.f32 %v560, %v150
    %v610 = vmul.f32 %v561, %v151
    %v611 = vmul.f32 %v562, %v152
    %v612 = vmul.f32 %v563, %v153
    %v613 = vadd.f32 %v599, %v606
    %v614 = vadd.f32 %v600, %v607
    %v615 = vadd.f32 %v601, %v608
    %v616 = vadd.f32 %v602, %v609
    %v617 = vadd.f32 %v603, %v610
    %v618 = vadd.f32 %v604, %v611
    %v619 = vadd.f32 %v605, %v612
    %v620 = vmul.f32 %v543, %v256
    %v621 = vmul.f32 %v544, %v257
    %v622 = vmul.f32 %v545, %v258
    %v623 = vmul.f32 %v546, %v259
    %v624 = vmul.f32 %v547, %v260
    %v625 = vmul.f32 %v548, %v261
    %v626 = vmul.f32 %v549, %v262
    %v627 = vmul.f32 %v557, %v154
    %v628 = vmul.f32 %v558, %v155
    %v629 = vmul.f32 %v559, %v156
    %v630 = vmul.f32 %v560, %v157
    %v631 = vmul.f32 %v561, %v158
    %v632 = vmul.f32 %v562, %v159
    %v633 = vmul.f32 %v563, %v160
    %v634 = vadd.f32 %v620, %v627
    %v635 = vadd.f32 %v621, %v628
    %v636 = vadd.f32 %v622, %v629
    %v637 = vadd.f32 %v623, %v630
    %v638 = vadd.f32 %v624, %v631
    %v639 = vadd.f32 %v625, %v632
    %v640 = vadd.f32 %v626, %v633
    %s641 = scalar_lea.vmem %s0, 280
    %v642 = vld [vmem:[%s641] sm:$0xff]
    %v643 = vld [vmem:[%s641 + $0x8] sm:$0xff]
    %v644 = vld [vmem:[%s641 + $0x10] sm:$0xff]
    %v645 = vld [vmem:[%s641 + $0x18] sm:$0xff]
    %v646 = vld [vmem:[%s641 + $0x20] sm:$0xff]
    %v647 = vld [vmem:[%s641 + $0x28] sm:$0xff]
    %v648 = vld [vmem:[%s641 + $0x30] sm:$0x1]
    %v649 = vmul.f32 %v543, %v642
    %v650 = vmul.f32 %v544, %v643
    %v651 = vmul.f32 %v545, %v644
    %v652 = vmul.f32 %v546, %v645
    %v653 = vmul.f32 %v547, %v646
    %v654 = vmul.f32 %v548, %v647
    %v655 = vmul.f32 %v549, %v648
    %v656 = vld [vmem:[%s0] sm:$0xff]
    %v657 = vld [vmem:[%s0 + $0x8] sm:$0xff]
    %v658 = vld [vmem:[%s0 + $0x10] sm:$0xff]
    %v659 = vld [vmem:[%s0 + $0x18] sm:$0xff]
    %v660 = vld [vmem:[%s0 + $0x20] sm:$0xff]
    %v661 = vld [vmem:[%s0 + $0x28] sm:$0xff]
    %v662 = vld [vmem:[%s0 + $0x30] sm:$0x1]
    %v663 = vmul.f32 %v557, %v656
    %v664 = vmul.f32 %v558, %v657
    %v665 = vmul.f32 %v559, %v658
    %v666 = vmul.f32 %v560, %v659
    %v667 = vmul.f32 %v561, %v660
    %v668 = vmul.f32 %v562, %v661
    %v669 = vmul.f32 %v563, %v662
    %v670 = vadd.f32 %v649, %v663
    %v671 = vadd.f32 %v650, %v664
    %v672 = vadd.f32 %v651, %v665
    %v673 = vadd.f32 %v652, %v666
    %v674 = vadd.f32 %v653, %v667
    %v675 = vadd.f32 %v654, %v668
    %v676 = vadd.f32 %v655, %v669
    %v677 = vsub.f32 %v571, %v28
    %v678 = vsub.f32 %v572, %v29
    %v679 = vsub.f32 %v573, %v30
    %v680 = vsub.f32 %v574, %v31
    %v681 = vsub.f32 %v575, %v32
    %v682 = vsub.f32 %v576, %v33
    %v683 = vsub.f32 %v577, %v34
    %v684 = vmul.f32 %v20, %v677
    %v685 = vmul.f32 %v21, %v678
    %v686 = vmul.f32 %v22, %v679
    %v687 = vmul.f32 %v23, %v680
    %v688 = vmul.f32 %v24, %v681
    %v689 = vmul.f32 %v25, %v682
    %v690 = vmul.f32 %v26, %v683
    %v691 = vsub.f32 %v592, %v36
    %v692 = vsub.f32 %v593, %v37
    %v693 = vsub.f32 %v594, %v38
    %v694 = vsub.f32 %v595, %v39
    %v695 = vsub.f32 %v596, %v40
    %v696 = vsub.f32 %v597, %v41
    %v697 = vsub.f32 %v598, %v42
    %v698 = vmul.f32 %v20, %v691
    %v699 = vmul.f32 %v21, %v692
    %v700 = vmul.f32 %v22, %v693
    %v701 = vmul.f32 %v23, %v694
    %v702 = vmul.f32 %v24, %v695
    %v703 = vmul.f32 %v25, %v696
    %v704 = vmul.f32 %v26, %v697
    %v705 = vsub.f32 %v613, %v44
    %v706 = vsub.f32 %v614, %v45
    %v707 = vsub.f32 %v615, %v46
    %v708 = vsub.f32 %v616, %v47
    %v709 = vsub.f32 %v617, %v48
    %v710 = vsub.f32 %v618, %v49
    %v711 = vsub.f32 %v619, %v50
    %v712 = vmul.f32 %v20, %v705
    %v713 = vmul.f32 %v21, %v706
    %v714 = vmul.f32 %v22, %v707
    %v715 = vmul.f32 %v23, %v708
    %v716 = vmul.f32 %v24, %v709
    %v717 = vmul.f32 %v25, %v710
    %v718 = vmul.f32 %v26, %v711
    %v719 = vsub.f32 %v634, %v52
    %v720 = vsub.f32 %v635, %v53
    %v721 = vsub.f32 %v636, %v54
    %v722 = vsub.f32 %v637, %v55
    %v723 = vsub.f32 %v638, %v56
    %v724 = vsub.f32 %v639, %v57
    %v725 = vsub.f32 %v640, %v58
    %v726 = vmul.f32 %v20, %v719
    %v727 = vmul.f32 %v21, %v720
    %v728 = vmul.f32 %v22, %v721
    %v729 = vmul.f32 %v23, %v722
    %v730 = vmul.f32 %v24, %v723
    %v731 = vmul.f32 %v25, %v724
    %v732 = vmul.f32 %v26, %v725
    %v733 = vmul.f32 %v684, %v684
    %v734 = vmul.f32 %v685, %v685
    %v735 = vmul.f32 %v686, %v686
    %v736 = vmul.f32 %v687, %v687
    %v737 = vmul.f32 %v688, %v688
    %v738 = vmul.f32 %v689, %v689
    %v739 = vmul.f32 %v690, %v690
    %v740 = vmul.f32 %v698, %v698
    %v741 = vmul.f32 %v699, %v699
    %v742 = vmul.f32 %v700, %v700
    %v743 = vmul.f32 %v701, %v701
    %v744 = vmul.f32 %v702, %v702
    %v745 = vmul.f32 %v703, %v703
    %v746 = vmul.f32 %v704, %v704
    %v747 = vadd.f32 %v733, %v740
    %v748 = vadd.f32 %v734, %v741
    %v749 = vadd.f32 %v735, %v742
    %v750 = vadd.f32 %v736, %v743
    %v751 = vadd.f32 %v737, %v744
    %v752 = vadd.f32 %v738, %v745
    %v753 = vadd.f32 %v739, %v746
    %v754 = vmul.f32 %v712, %v712
    %v755 = vmul.f32 %v713, %v713
    %v756 = vmul.f32 %v714, %v714
    %v757 = vmul.f32 %v715, %v715
    %v758 = vmul.f32 %v716, %v716
    %v759 = vmul.f32 %v717, %v717
    %v760 = vmul.f32 %v718, %v718
    %v761 = vadd.f32 %v747, %v754
    %v762 = vadd.f32 %v748, %v755
    %v763 = vadd.f32 %v749, %v756
    %v764 = vadd.f32 %v750, %v757
    %v765 = vadd.f32 %v751, %v758
    %v766 = vadd.f32 %v752, %v759
    %v767 = vadd.f32 %v753, %v760
    %v768 = vmul.f32 %v726, %v726
    %v769 = vmul.f32 %v727, %v727
    %v770 = vmul.f32 %v728, %v728
    %v771 = vmul.f32 %v729, %v729
    %v772 = vmul.f32 %v730, %v730
    %v773 = vmul.f32 %v731, %v731
    %v774 = vmul.f32 %v732, %v732
    %v775 = vadd.f32 %v761, %v768
    %v776 = vadd.f32 %v762, %v769
    %v777 = vadd.f32 %v763, %v770
    %v778 = vadd.f32 %v764, %v771
    %v779 = vadd.f32 %v765, %v772
    %v780 = vadd.f32 %v766, %v773
    %v781 = vadd.f32 %v767, %v774
    %v782 = vld [vmem:[#allocation2] sm:$0x1]
    %vm783 = vcmask 15360
    %v784 = vsel %vm783, %v775, 0.0
    %v785 = vsel %vm783, %v776, 0.0
    %v786 = vadd.f32 %v784, %v785
    %v787 = vsel %vm783, %v777, 0.0
    %v788 = vadd.f32 %v786, %v787
    %v789 = vsel %vm783, %v778, 0.0
    %v790 = vadd.f32 %v788, %v789
    %v791 = vsel %vm783, %v779, 0.0
    %v792 = vadd.f32 %v790, %v791
    %v793 = vsel %vm783, %v780, 0.0
    %v794 = vadd.f32 %v792, %v793
    %vm795 = vcmask 8192
    %v796 = vsel %vm795, %v781, 0.0
    %v797 = vadd.f32 %v794, %v796
    %v798 = vrot.slane %v797, 4
    %v799 = vadd.f32 %v797, %v798
    %v800 = vrot.slane %v799, 2
    %v801 = vadd.f32 %v799, %v800
    %v802 = vrot.slane %v801, 1
    %v803 = vadd.f32 %v801, %v802
    %v804 = vadd.f32 %v782, %v803
    %805 = vst.msk [vmem:[#allocation2] sm:$0x1] %vm795, %v804
    %v806 = vsub.f32 %v670, %v20
    %v807 = vsub.f32 %v671, %v21
    %v808 = vsub.f32 %v672, %v22
    %v809 = vsub.f32 %v673, %v23
    %v810 = vsub.f32 %v674, %v24
    %v811 = vsub.f32 %v675, %v25
    %v812 = vsub.f32 %v676, %v26
    %v813 = vmul.f32 %v20, %v806
    %v814 = vmul.f32 %v21, %v807
    %v815 = vmul.f32 %v22, %v808
    %v816 = vmul.f32 %v23, %v809
    %v817 = vmul.f32 %v24, %v810
    %v818 = vmul.f32 %v25, %v811
    %v819 = vmul.f32 %v26, %v812
    %v820 = vld [vmem:[#allocation3] sm:$0x1]
    %v821 = vmul.f32 %v813, %v813
    %v822 = vmul.f32 %v814, %v814
    %v823 = vmul.f32 %v815, %v815
    %v824 = vmul.f32 %v816, %v816
    %v825 = vmul.f32 %v817, %v817
    %v826 = vmul.f32 %v818, %v818
    %v827 = vmul.f32 %v819, %v819
    %v828 = vsel %vm783, %v821, 0.0
    %v829 = vsel %vm783, %v822, 0.0
    %v830 = vadd.f32 %v828, %v829
    %v831 = vsel %vm783, %v823, 0.0
    %v832 = vadd.f32 %v830, %v831
    %v833 = vsel %vm783, %v824, 0.0
    %v834 = vadd.f32 %v832, %v833
    %v835 = vsel %vm783, %v825, 0.0
    %v836 = vadd.f32 %v834, %v835
    %v837 = vsel %vm783, %v826, 0.0
    %v838 = vadd.f32 %v836, %v837
    %v839 = vsel %vm795, %v827, 0.0
    %v840 = vadd.f32 %v838, %v839
    %v841 = vrot.slane %v840, 4
    %v842 = vadd.f32 %v840, %v841
    %v843 = vrot.slane %v842, 2
    %v844 = vadd.f32 %v842, %v843
    %v845 = vrot.slane %v844, 1
    %v846 = vadd.f32 %v844, %v845
    %v847 = vadd.f32 %v820, %v846
    %848 = vst.msk [vmem:[#allocation3] sm:$0x1] %vm795, %v847
    %v849 = vsel %vm783, %v684, 0.0
    %v850 = vsel %vm783, %v685, 0.0
    %v851 = vadd.f32 %v849, %v850
    %v852 = vsel %vm783, %v686, 0.0
    %v853 = vadd.f32 %v851, %v852
    %v854 = vsel %vm783, %v687, 0.0
    %v855 = vadd.f32 %v853, %v854
    %v856 = vsel %vm783, %v688, 0.0
    %v857 = vadd.f32 %v855, %v856
    %v858 = vsel %vm783, %v689, 0.0
    %v859 = vadd.f32 %v857, %v858
    %v860 = vsel %vm795, %v690, 0.0
    %v861 = vadd.f32 %v859, %v860
    %v862 = vrot.slane %v861, 4
    %v863 = vadd.f32 %v861, %v862
    %v864 = vrot.slane %v863, 2
    %v865 = vadd.f32 %v863, %v864
    %v866 = vrot.slane %v865, 1
    %v867 = vadd.f32 %v865, %v866
    %v868 = vsel %vm783, %v698, 0.0
    %v869 = vsel %vm783, %v699, 0.0
    %v870 = vadd.f32 %v868, %v869
    %v871 = vsel %vm783, %v700, 0.0
    %v872 = vadd.f32 %v870, %v871
    %v873 = vsel %vm783, %v701, 0.0
    %v874 = vadd.f32 %v872, %v873
    %v875 = vsel %vm783, %v702, 0.0
    %v876 = vadd.f32 %v874, %v875
    %v877 = vsel %vm783, %v703, 0.0
    %v878 = vadd.f32 %v876, %v877
    %v879 = vsel %vm795, %v704, 0.0
    %v880 = vadd.f32 %v878, %v879
    %v881 = vrot.slane %v880, 4
    %v882 = vadd.f32 %v880, %v881
    %v883 = vrot.slane %v882, 2
    %v884 = vadd.f32 %v882, %v883
    %v885 = vrot.slane %v884, 1
    %v886 = vadd.f32 %v884, %v885
    %v887 = vsel %vm783, %v712, 0.0
    %v888 = vsel %vm783, %v713, 0.0
    %v889 = vadd.f32 %v887, %v888
    %v890 = vsel %vm783, %v714, 0.0
    %v891 = vadd.f32 %v889, %v890
    %v892 = vsel %vm783, %v715, 0.0
    %v893 = vadd.f32 %v891, %v892
    %v894 = vsel %vm783, %v716, 0.0
    %v895 = vadd.f32 %v893, %v894
    %v896 = vsel %vm783, %v717, 0.0
    %v897 = vadd.f32 %v895, %v896
    %v898 = vsel %vm795, %v718, 0.0
    %v899 = vadd.f32 %v897, %v898
    %v900 = vrot.slane %v899, 4
    %v901 = vadd.f32 %v899, %v900
    %v902 = vrot.slane %v901, 2
    %v903 = vadd.f32 %v901, %v902
    %v904 = vrot.slane %v903, 1
    %v905 = vadd.f32 %v903, %v904
    %v906 = vsel %vm783, %v726, 0.0
    %v907 = vsel %vm783, %v727, 0.0
    %v908 = vadd.f32 %v906, %v907
    %v909 = vsel %vm783, %v728, 0.0
    %v910 = vadd.f32 %v908, %v909
    %v911 = vsel %vm783, %v729, 0.0
    %v912 = vadd.f32 %v910, %v911
    %v913 = vsel %vm783, %v730, 0.0
    %v914 = vadd.f32 %v912, %v913
    %v915 = vsel %vm783, %v731, 0.0
    %v916 = vadd.f32 %v914, %v915
    %v917 = vsel %vm795, %v732, 0.0
    %v918 = vadd.f32 %v916, %v917
    %v919 = vrot.slane %v918, 4
    %v920 = vadd.f32 %v918, %v919
    %v921 = vrot.slane %v920, 2
    %v922 = vadd.f32 %v920, %v921
    %v923 = vrot.slane %v922, 1
    %v924 = vadd.f32 %v922, %v923
    %v925 = vsub.f32 %v905, %v867
    %v926 = vmul.f32 %v925, 0.5
    %v927 = vadd.f32 %v867, %v926
    %v928 = vadd.f32 %v927, 1e-06
    %v929 = vsub.f32 %v924, %v886
    %v930 = vmul.f32 %v929, 0.5
    %v931 = vadd.f32 %v886, %v930
    %v932 = vadd.f32 %v931, 1e-06
    %v933 = vmul.f32 %v928, %v928
    %v934 = vmul.f32 %v932, %v932
    %v935 = vadd.f32 %v933, %v934
    %v936 = vrsqrt.pop %v935
    %v937 = vmul.f32 %v935, %v936
    %vm938 = vcmp.eq.f32.partialorder %v935, inf
    %v939 = vsel %vm938, %v935, %v937
    %vm940 = vcmp.eq.f32.partialorder %v935, 0.0
    %v941 = vand.u32 %v935, 2147483648
    %v942 = vsel %vm940, %v941, %v939
    %v943 = vld [vmem:[#allocation4] sm:$0x1]
    %v944 = vadd.f32 %v943, %v942
    %945 = vst.msk [vmem:[#allocation4] sm:$0x1] %vm795, %v944
    // Predicated region
    $region14: #{tpu_custom_call.1} parent=1 // pred_check
      %p946 = pneg %p12
    $region15: #{tpu_custom_call.1} parent=1 // pred_check_branch
      %948 = sbr.rel (%p946) target = $region17
    $region16: #{tpu_custom_call.1} parent=1 // pred_region
      %v949 = vld [vmem:[#allocation2] sm:$0x1]
      %v950 = vsel %vm795, %v949, 0.0
      %951 = vadd.xlane.f32.xlu0 %v950
      %v952 = vpop.xlane.xlu0 %951
      %v953 = vmul.f32 %v952, 0.010204081
      %v954 = vld [vmem:[#allocation3] sm:$0x1]
      %v955 = vsel %vm795, %v954, 0.0
      %956 = vadd.xlane.f32.xlu0 %v955
      %v957 = vpop.xlane.xlu0 %956
      %v958 = vmul.f32 %v957, 0.010204081
      %v959 = vld [vmem:[#allocation4] sm:$0x1]
      %v960 = vsel %vm795, %v959, 0.0
      %961 = vadd.xlane.f32.xlu0 %v960
      %v962 = vpop.xlane.xlu0 %961
      %v963 = vmul.f32 %v962, 0.5
      %v964 = vmul.f32 %v953, 5.0
      %v965 = vmul.f32 %v963, 0.1
      %v966 = vadd.f32 %v964, %v958
      %v967 = vadd.f32 %v966, %v965
      %v968 = vlaneseq
      %v969 = vand.u32 %v968, 127
      %vm970 = vcmp.eq.s32.totalorder %v969, 0
      %v971 = vsel %vm970, %v967, 0.0
      %vm972 = vcmp.eq.s32.totalorder %v969, 1
      %v973 = vsel %vm972, %v964, 0.0
      %v974 = vadd.f32 %v971, %v973
      %vm975 = vcmp.eq.s32.totalorder %v969, 2
      %v976 = vsel %vm975, %v958, 0.0
      %v977 = vadd.f32 %v974, %v976
      %vm978 = vcmp.eq.s32.totalorder %v969, 3
      %v979 = vsel %vm978, %v965, 0.0
      %v980 = vadd.f32 %v977, %v979
      %981 = vst [vmem:[#allocation5] sm:$0x1] %v980
    $region17: #{tpu_custom_call.1} parent=1 // pred_fallthru
      _
    // Predicated region
    $region18: #{tpu_custom_call.1} parent=1 // pred_check
      _
    $region19: #{tpu_custom_call.1} parent=1 // pred_check_branch
      %983 = sbr.rel (0) target = $region21
    $region20: #{tpu_custom_call.1} parent=1 // pred_region
      %s985 = ssub.s32 16, 16
      %986 = vsyncadd [#allocation6], %s985
      %s988 = sshll.u32 [#allocation5], 4
      %s989 = int_to_ptr.vmem [resolvable:$true] %s988
      %991 = dma.vmem_to_hbm [thread:$0]  %s989, 16, %s2, [#allocation6]
    $region21: #{tpu_custom_call.1} parent=1 // pred_fallthru
      _
    // Predicated region
    $region22: #{tpu_custom_call.1} parent=1 // pred_check
      _
    $region23: #{tpu_custom_call.1} parent=1 // pred_check_branch
      %993 = sbr.rel (0) target = $region25
    $region24: #{tpu_custom_call.1} parent=1 // pred_region
      %994 = dma.done [#allocation6], 16
    $region25: #{tpu_custom_call.1} parent=1 // pred_fallthru
      _
    %995 = vsyncpa [#allocation6], 1

</llo_original>
